<compile_context>
chip_gen: v5e
topology: v5e:2x2
jax: 0.10.0
libtpu: 0.0.40
codegen_flags: <defaults>
</compile_context>

<pallas_src>
import functools
import math

import jax
import jax.numpy as jnp
from jax.experimental import pallas as pl
from jax.experimental.pallas import tpu as pltpu

EPS = 1e-6
NEG_INF = -1000000000.0


def _encoder_layer_kernel(x_ref, mask_ref,
                          wq_ref, bq_ref, wk_ref, bk_ref, wv_ref, bv_ref,
                          wo_ref, bo_ref,
                          w1_ref, b1_ref, w2_ref, b2_ref,
                          g1_ref, be1_ref, g2_ref, be2_ref,
                          out_ref, *, bt, seq, head, d_k):
    D = head * d_k
    M = bt * seq
    # Flatten (bt, S) into the MXU M dimension (leading-dim merge: free).
    x = x_ref[...].reshape(M, D).astype(jnp.float32)

    def layer_norm(v, gamma, beta):
        # single-pass mean / mean-square; unbiased (D-1) variance; eps on std
        mean = jnp.mean(v, axis=-1, keepdims=True)
        msq = jnp.mean(v * v, axis=-1, keepdims=True)
        var = (msq - mean * mean) * (D / (D - 1))
        std = jnp.sqrt(jnp.maximum(var, 0.0))
        return gamma * (v - mean) / (EPS + std) + beta

    # ---------------- sublayer 0: multi-head self-attention ----------------
    y = layer_norm(x, g1_ref[0], be1_ref[0])                         # (M, D)
    scale = 1.0 / math.sqrt(d_k)
    q = (jnp.dot(y, wq_ref[...], preferred_element_type=jnp.float32)
         + bq_ref[0]) * scale                     # fold 1/sqrt(d_k) into Q
    k = jnp.dot(y, wk_ref[...], preferred_element_type=jnp.float32) + bk_ref[0]
    v = jnp.dot(y, wv_ref[...], preferred_element_type=jnp.float32) + bv_ref[0]

    # leading-dim split back to (bt, S, D): free, lanes untouched
    q3 = q.reshape(bt, seq, D)
    k3 = k.reshape(bt, seq, D)
    v3 = v.reshape(bt, seq, D)

    masked = mask_ref[...] == 0                   # (head, S, S), one compare

    acc = jnp.zeros((M, D), jnp.float32)
    for h in range(head):                         # static unroll over heads
        lo = h * d_k
        qh = q3[:, :, lo:lo + d_k]                # (bt, S, d_k) lane slice
        kh = k3[:, :, lo:lo + d_k]
        vh = v3[:, :, lo:lo + d_k]
        # contract d_k directly (no materialized K transpose)
        s = jnp.einsum('bqd,bkd->bqk', qh, kh,
                       preferred_element_type=jnp.float32)          # (bt,S,S)
        s = jnp.where(masked[h][None], NEG_INF, s)  # masked_fill semantics
        s = s - jnp.max(s, axis=-1, keepdims=True)
        e = jnp.exp(s)
        denom = jnp.sum(e, axis=-1, keepdims=True)
        r = pl.reciprocal(denom, approx=True)
        r = r * (2.0 - denom * r)                 # one Newton step (exact-ish)
        p = e * r
        # TODO(synk): attention-probability dropout omitted (eval semantics).
        ctx = jnp.einsum('bqk,bkd->bqd', p, vh,
                         preferred_element_type=jnp.float32)        # (bt,S,dk)
        # accumulate through the matching sublane row-slice of Wo (no concat)
        acc = acc + jnp.dot(ctx.reshape(M, d_k), wo_ref[lo:lo + d_k, :],
                            preferred_element_type=jnp.float32)
    x1 = x + acc + bo_ref[0]                      # residual (dropout = id)

    # ---------------- sublayer 1: position-wise feed-forward ---------------
    y2 = layer_norm(x1, g2_ref[0], be2_ref[0])
    h1 = jnp.maximum(
        jnp.dot(y2, w1_ref[...], preferred_element_type=jnp.float32) + b1_ref[0],
        0.0)
    ff = jnp.dot(h1, w2_ref[...], preferred_element_type=jnp.float32) + b2_ref[0]
    out_ref[...] = (x1 + ff).reshape(bt, seq, D).astype(out_ref.dtype)


def _pick_batch_block(batch, seq):
    """Batch elements per grid step: fill the MXU M dim (~128 rows) while
    keeping >= 2 grid steps when batch >= 2 (v7x has 2 TensorCores)."""
    target = max(1, 128 // max(seq, 1))
    bt = max(1, min(batch, target))
    while batch % bt:
        bt -= 1
    if batch >= 2 and batch // bt < 2:
        bt = max(1, batch // 2)
        while batch % bt:
            bt -= 1
    return bt


def encoder_layer(x, mask, params, *, head, batch_block=None):
    B, S, D = x.shape
    d_k = D // head
    d_ff = params["w1"].shape[1]
    bt = batch_block if batch_block is not None else _pick_batch_block(B, S)
    assert B % bt == 0, "batch must be divisible by the batch block"

    full2d = lambda shape: pl.BlockSpec(shape, lambda b: (0, 0))
    kernel = functools.partial(_encoder_layer_kernel,
                               bt=bt, seq=S, head=head, d_k=d_k)

    return pl.pallas_call(
        kernel,
        out_shape=jax.ShapeDtypeStruct((B, S, D), x.dtype),
        grid_spec=pltpu.PrefetchScalarGridSpec(
            num_scalar_prefetch=0,
            grid=(B // bt,),
            in_specs=[
                pl.BlockSpec((bt, S, D), lambda b: (b, 0, 0)),         # x
                pl.BlockSpec((head, S, S), lambda b: (0, 0, 0)),       # mask
                full2d((D, D)), full2d((1, D)),                        # Wq, bq
                full2d((D, D)), full2d((1, D)),                        # Wk, bk
                full2d((D, D)), full2d((1, D)),                        # Wv, bv
                full2d((D, D)), full2d((1, D)),                        # Wo, bo
                full2d((D, d_ff)), full2d((1, d_ff)),                  # W1, b1
                full2d((d_ff, D)), full2d((1, D)),                     # W2, b2
                full2d((1, D)), full2d((1, D)),                        # ln1 a,b
                full2d((1, D)), full2d((1, D)),                        # ln2 a,b
            ],
            out_specs=pl.BlockSpec((bt, S, D), lambda b: (b, 0, 0)),
        ),
        compiler_params=pltpu.CompilerParams(
            dimension_semantics=("parallel",)),
    )(x, mask,
      params["wq"], params["bq"], params["wk"], params["bk"],
      params["wv"], params["bv"], params["wo"], params["bo"],
      params["w1"], params["b1"], params["w2"], params["b2"],
      params["ln1_a"], params["ln1_b"], params["ln2_a"], params["ln2_b"])


# ------------------------- pure-JAX reference ------------------------------
def reference(x, mask, params, *, head):
    B, S, D = x.shape
    d_k = D // head

    def layer_norm(v, g, b):
        mean = jnp.mean(v, axis=-1, keepdims=True)
        var = jnp.sum((v - mean) ** 2, axis=-1, keepdims=True) / (D - 1)
        return g * (v - mean) / (EPS + jnp.sqrt(var)) + b

    y = layer_norm(x, params["ln1_a"][0], params["ln1_b"][0])
    q = y @ params["wq"] + params["bq"][0]
    k = y @ params["wk"] + params["bk"][0]
    v = y @ params["wv"] + params["bv"][0]
    q = q.reshape(B, S, head, d_k).transpose(0, 2, 1, 3)
    k = k.reshape(B, S, head, d_k).transpose(0, 2, 1, 3)
    v = v.reshape(B, S, head, d_k).transpose(0, 2, 1, 3)
    s = jnp.einsum("bhqd,bhkd->bhqk", q, k) / math.sqrt(d_k)
    s = jnp.where(mask[None] == 0, NEG_INF, s)
    p = jax.nn.softmax(s, axis=-1)
    a = jnp.einsum("bhqk,bhkd->bhqd", p, v).transpose(0, 2, 1, 3).reshape(B, S, D)
    x1 = x + (a @ params["wo"] + params["bo"][0])
    y2 = layer_norm(x1, params["ln2_a"][0], params["ln2_b"][0])
    ff = jnp.maximum(y2 @ params["w1"] + params["b1"][0], 0.0) @ params["w2"] + params["b2"][0]
    return x1 + ff


if __name__ == "__main__":
    B, S, D, HEAD, D_FF = 2, 8, 128, 8, 64   # small transformer-like shapes

    keys = jax.random.split(jax.random.PRNGKey(0), 13)
    init = lambda k, shape: (jax.random.normal(k, shape, jnp.float32) * 0.02)

    params = {
        "wq": init(keys[0], (D, D)),  "bq": init(keys[1], (1, D)),
        "wk": init(keys[2], (D, D)),  "bk": init(keys[3], (1, D)),
        "wv": init(keys[4], (D, D)),  "bv": init(keys[5], (1, D)),
        "wo": init(keys[6], (D, D)),  "bo": init(keys[7], (1, D)),
        "w1": init(keys[8], (D, D_FF)), "b1": init(keys[9], (1, D_FF)),
        "w2": init(keys[10], (D_FF, D)), "b2": init(keys[11], (1, D)),
        "ln1_a": jnp.ones((1, D), jnp.float32),
        "ln1_b": jnp.zeros((1, D), jnp.float32),
        "ln2_a": jnp.ones((1, D), jnp.float32),
        "ln2_b": jnp.zeros((1, D), jnp.float32),
    }

    x = jax.random.normal(keys[12], (B, S, D), jnp.float32)
    # Original script uses an all-zeros mask (everything masked -> uniform
    # attention); shape (head, S, S) mirrors mask.unsqueeze(0) broadcasting.
    mask = jnp.zeros((HEAD, S, S), jnp.float32)

    out = encoder_layer(x, mask, params, head=HEAD)
    out = jax.block_until_ready(out)

    ref = reference(x, mask, params, head=HEAD)
    assert out.shape == (B, S, D)
    assert bool(jnp.allclose(out, ref, atol=1e-4, rtol=1e-4)), "mismatch vs reference"

    print("KERNEL_OK")
</pallas_src>

<mosaic_0001>
module attributes {stable_mosaic.version = 11 : i64} {
  func.func @_encoder_layer_kernel(%arg0: i32, %arg1: memref<1x8x128xf32, #tpu.memory_space<vmem>>, %arg2: memref<8x8x8xf32, #tpu.memory_space<vmem>>, %arg3: memref<128x128xf32, #tpu.memory_space<vmem>>, %arg4: memref<1x128xf32, #tpu.memory_space<vmem>>, %arg5: memref<128x128xf32, #tpu.memory_space<vmem>>, %arg6: memref<1x128xf32, #tpu.memory_space<vmem>>, %arg7: memref<128x128xf32, #tpu.memory_space<vmem>>, %arg8: memref<1x128xf32, #tpu.memory_space<vmem>>, %arg9: memref<128x128xf32, #tpu.memory_space<vmem>>, %arg10: memref<1x128xf32, #tpu.memory_space<vmem>>, %arg11: memref<128x64xf32, #tpu.memory_space<vmem>>, %arg12: memref<1x64xf32, #tpu.memory_space<vmem>>, %arg13: memref<64x128xf32, #tpu.memory_space<vmem>>, %arg14: memref<1x128xf32, #tpu.memory_space<vmem>>, %arg15: memref<1x128xf32, #tpu.memory_space<vmem>>, %arg16: memref<1x128xf32, #tpu.memory_space<vmem>>, %arg17: memref<1x128xf32, #tpu.memory_space<vmem>>, %arg18: memref<1x128xf32, #tpu.memory_space<vmem>>, %arg19: memref<1x8x128xf32, #tpu.memory_space<vmem>>) attributes {dimension_semantics = [#tpu.dimension_semantics<parallel>], iteration_bounds = array<i64: 2>, scalar_prefetch = 0 : i64, scratch_operands = 0 : i64, tpu.core_type = #tpu.core_type<tc>, window_params = [{transform_indices = @transform_0, window_bounds = array<i64: 1, 8, 128>}, {pipeline_mode = #tpu.pipeline_mode<synchronous>, transform_indices = @transform_1, window_bounds = array<i64: 8, 8, 8>}, {pipeline_mode = #tpu.pipeline_mode<synchronous>, transform_indices = @transform_2, window_bounds = array<i64: 128, 128>}, {pipeline_mode = #tpu.pipeline_mode<synchronous>, transform_indices = @transform_3, window_bounds = array<i64: 1, 128>}, {pipeline_mode = #tpu.pipeline_mode<synchronous>, transform_indices = @transform_4, window_bounds = array<i64: 128, 128>}, {pipeline_mode = #tpu.pipeline_mode<synchronous>, transform_indices = @transform_5, window_bounds = array<i64: 1, 128>}, {pipeline_mode = #tpu.pipeline_mode<synchronous>, transform_indices = @transform_6, window_bounds = array<i64: 128, 128>}, {pipeline_mode = #tpu.pipeline_mode<synchronous>, transform_indices = @transform_7, window_bounds = array<i64: 1, 128>}, {pipeline_mode = #tpu.pipeline_mode<synchronous>, transform_indices = @transform_8, window_bounds = array<i64: 128, 128>}, {pipeline_mode = #tpu.pipeline_mode<synchronous>, transform_indices = @transform_9, window_bounds = array<i64: 1, 128>}, {pipeline_mode = #tpu.pipeline_mode<synchronous>, transform_indices = @transform_10, window_bounds = array<i64: 128, 64>}, {pipeline_mode = #tpu.pipeline_mode<synchronous>, transform_indices = @transform_11, window_bounds = array<i64: 1, 64>}, {pipeline_mode = #tpu.pipeline_mode<synchronous>, transform_indices = @transform_12, window_bounds = array<i64: 64, 128>}, {pipeline_mode = #tpu.pipeline_mode<synchronous>, transform_indices = @transform_13, window_bounds = array<i64: 1, 128>}, {pipeline_mode = #tpu.pipeline_mode<synchronous>, transform_indices = @transform_14, window_bounds = array<i64: 1, 128>}, {pipeline_mode = #tpu.pipeline_mode<synchronous>, transform_indices = @transform_15, window_bounds = array<i64: 1, 128>}, {pipeline_mode = #tpu.pipeline_mode<synchronous>, transform_indices = @transform_16, window_bounds = array<i64: 1, 128>}, {pipeline_mode = #tpu.pipeline_mode<synchronous>, transform_indices = @transform_17, window_bounds = array<i64: 1, 128>}, {transform_indices = @transform_18, window_bounds = array<i64: 1, 8, 128>}]} {
    %c0 = arith.constant 0 : index
    %c0_0 = arith.constant 0 : index
    %c0_1 = arith.constant 0 : index
    %0 = vector.load %arg1[%c0, %c0_0, %c0_1] : memref<1x8x128xf32, #tpu.memory_space<vmem>>, vector<1x8x128xf32>
    %1 = vector.shape_cast %0 : vector<1x8x128xf32> to vector<8x128xf32>
    %c0_2 = arith.constant 0 : index
    %c0_3 = arith.constant 0 : index
    %2 = vector.load %arg15[%c0_2, %c0_3] : memref<1x128xf32, #tpu.memory_space<vmem>>, vector<1x128xf32>
    %3 = vector.shape_cast %2 : vector<1x128xf32> to vector<128xf32>
    %c0_4 = arith.constant 0 : index
    %c0_5 = arith.constant 0 : index
    %4 = vector.load %arg16[%c0_4, %c0_5] : memref<1x128xf32, #tpu.memory_space<vmem>>, vector<1x128xf32>
    %5 = vector.shape_cast %4 : vector<1x128xf32> to vector<128xf32>
    %cst = arith.constant dense<0.000000e+00> : vector<8xf32>
    %6 = vector.multi_reduction <add>, %1, %cst [1] : vector<8x128xf32> to vector<8xf32>
    %7 = vector.shape_cast %6 : vector<8xf32> to vector<8x1xf32>
    %cst_6 = arith.constant 1.280000e+02 : f32
    %8 = vector.broadcast %cst_6 : f32 to vector<8x1xf32>
    %9 = arith.divf %7, %8 : vector<8x1xf32>
    %10 = arith.mulf %1, %1 : vector<8x128xf32>
    %cst_7 = arith.constant dense<0.000000e+00> : vector<8xf32>
    %11 = vector.multi_reduction <add>, %10, %cst_7 [1] : vector<8x128xf32> to vector<8xf32>
    %12 = vector.shape_cast %11 : vector<8xf32> to vector<8x1xf32>
    %cst_8 = arith.constant 1.280000e+02 : f32
    %13 = vector.broadcast %cst_8 : f32 to vector<8x1xf32>
    %14 = arith.divf %12, %13 : vector<8x1xf32>
    %15 = arith.mulf %9, %9 : vector<8x1xf32>
    %16 = arith.subf %14, %15 : vector<8x1xf32>
    %cst_9 = arith.constant 1.00787401 : f32
    %17 = vector.broadcast %cst_9 : f32 to vector<8x1xf32>
    %18 = arith.mulf %16, %17 : vector<8x1xf32>
    %cst_10 = arith.constant 0.000000e+00 : f32
    %19 = vector.broadcast %cst_10 : f32 to vector<8x1xf32>
    %20 = arith.maximumf %18, %19 : vector<8x1xf32>
    %21 = math.sqrt %20 : vector<8x1xf32>
    %22 = vector.broadcast %9 : vector<8x1xf32> to vector<8x128xf32>
    %23 = arith.subf %1, %22 : vector<8x128xf32>
    %24 = vector.shape_cast %3 : vector<128xf32> to vector<1x128xf32>
    %25 = vector.broadcast %24 : vector<1x128xf32> to vector<8x128xf32>
    %26 = arith.mulf %25, %23 : vector<8x128xf32>
    %cst_11 = arith.constant 9.99999997E-7 : f32
    %27 = vector.broadcast %cst_11 : f32 to vector<8x1xf32>
    %28 = arith.addf %27, %21 : vector<8x1xf32>
    %29 = vector.broadcast %28 : vector<8x1xf32> to vector<8x128xf32>
    %30 = arith.divf %26, %29 : vector<8x128xf32>
    %31 = vector.shape_cast %5 : vector<128xf32> to vector<1x128xf32>
    %32 = vector.broadcast %31 : vector<1x128xf32> to vector<8x128xf32>
    %33 = arith.addf %30, %32 : vector<8x128xf32>
    %c0_12 = arith.constant 0 : index
    %c0_13 = arith.constant 0 : index
    %34 = vector.load %arg3[%c0_12, %c0_13] : memref<128x128xf32, #tpu.memory_space<vmem>>, vector<128x128xf32>
    %cst_14 = arith.constant dense<0.000000e+00> : vector<8x128xf32>
    %35 = tpu.matmul %33, %34, %cst_14 {dimension_numbers = #tpu.dot_dimension_numbers<[1], [0], [0], [1], [0, 0, 1, 1], [], []>} : vector<8x128xf32>, vector<128x128xf32>, vector<8x128xf32> -> vector<8x128xf32>
    %c0_15 = arith.constant 0 : index
    %c0_16 = arith.constant 0 : index
    %36 = vector.load %arg4[%c0_15, %c0_16] : memref<1x128xf32, #tpu.memory_space<vmem>>, vector<1x128xf32>
    %37 = vector.shape_cast %36 : vector<1x128xf32> to vector<128xf32>
    %38 = vector.shape_cast %37 : vector<128xf32> to vector<1x128xf32>
    %39 = vector.broadcast %38 : vector<1x128xf32> to vector<8x128xf32>
    %40 = arith.addf %35, %39 : vector<8x128xf32>
    %cst_17 = arith.constant 2.500000e-01 : f32
    %41 = vector.broadcast %cst_17 : f32 to vector<8x128xf32>
    %42 = arith.mulf %40, %41 : vector<8x128xf32>
    %c0_18 = arith.constant 0 : index
    %c0_19 = arith.constant 0 : index
    %43 = vector.load %arg5[%c0_18, %c0_19] : memref<128x128xf32, #tpu.memory_space<vmem>>, vector<128x128xf32>
    %cst_20 = arith.constant dense<0.000000e+00> : vector<8x128xf32>
    %44 = tpu.matmul %33, %43, %cst_20 {dimension_numbers = #tpu.dot_dimension_numbers<[1], [0], [0], [1], [0, 0, 1, 1], [], []>} : vector<8x128xf32>, vector<128x128xf32>, vector<8x128xf32> -> vector<8x128xf32>
    %c0_21 = arith.constant 0 : index
    %c0_22 = arith.constant 0 : index
    %45 = vector.load %arg6[%c0_21, %c0_22] : memref<1x128xf32, #tpu.memory_space<vmem>>, vector<1x128xf32>
    %46 = vector.shape_cast %45 : vector<1x128xf32> to vector<128xf32>
    %47 = vector.shape_cast %46 : vector<128xf32> to vector<1x128xf32>
    %48 = vector.broadcast %47 : vector<1x128xf32> to vector<8x128xf32>
    %49 = arith.addf %44, %48 : vector<8x128xf32>
    %c0_23 = arith.constant 0 : index
    %c0_24 = arith.constant 0 : index
    %50 = vector.load %arg7[%c0_23, %c0_24] : memref<128x128xf32, #tpu.memory_space<vmem>>, vector<128x128xf32>
    %cst_25 = arith.constant dense<0.000000e+00> : vector<8x128xf32>
    %51 = tpu.matmul %33, %50, %cst_25 {dimension_numbers = #tpu.dot_dimension_numbers<[1], [0], [0], [1], [0, 0, 1, 1], [], []>} : vector<8x128xf32>, vector<128x128xf32>, vector<8x128xf32> -> vector<8x128xf32>
    %c0_26 = arith.constant 0 : index
    %c0_27 = arith.constant 0 : index
    %52 = vector.load %arg8[%c0_26, %c0_27] : memref<1x128xf32, #tpu.memory_space<vmem>>, vector<1x128xf32>
    %53 = vector.shape_cast %52 : vector<1x128xf32> to vector<128xf32>
    %54 = vector.shape_cast %53 : vector<128xf32> to vector<1x128xf32>
    %55 = vector.broadcast %54 : vector<1x128xf32> to vector<8x128xf32>
    %56 = arith.addf %51, %55 : vector<8x128xf32>
    %57 = vector.shape_cast %42 : vector<8x128xf32> to vector<1x8x128xf32>
    %58 = vector.shape_cast %49 : vector<8x128xf32> to vector<1x8x128xf32>
    %59 = vector.shape_cast %56 : vector<8x128xf32> to vector<1x8x128xf32>
    %c0_28 = arith.constant 0 : index
    %c0_29 = arith.constant 0 : index
    %c0_30 = arith.constant 0 : index
    %60 = vector.load %arg2[%c0_28, %c0_29, %c0_30] : memref<8x8x8xf32, #tpu.memory_space<vmem>>, vector<8x8x8xf32>
    %cst_31 = arith.constant 0.000000e+00 : f32
    %61 = vector.broadcast %cst_31 : f32 to vector<8x8x8xf32>
    %62 = arith.cmpf oeq, %60, %61 : vector<8x8x8xf32>
    %cst_32 = arith.constant 0.000000e+00 : f32
    %63 = vector.broadcast %cst_32 : f32 to vector<8x128xf32>
    %64 = vector.extract_strided_slice %57 {offsets = [0, 0, 0], sizes = [1, 8, 16], strides = [1, 1, 1]} : vector<1x8x128xf32> to vector<1x8x16xf32>
    %65 = vector.extract_strided_slice %58 {offsets = [0, 0, 0], sizes = [1, 8, 16], strides = [1, 1, 1]} : vector<1x8x128xf32> to vector<1x8x16xf32>
    %66 = vector.extract_strided_slice %59 {offsets = [0, 0, 0], sizes = [1, 8, 16], strides = [1, 1, 1]} : vector<1x8x128xf32> to vector<1x8x16xf32>
    "tpu.trace_start"() <{level = 10 : i32, message = "bqd,bkd->bqk"}> : () -> ()
    %cst_33 = arith.constant dense<0.000000e+00> : vector<1x8x8xf32>
    %67 = tpu.matmul %64, %65, %cst_33 {dimension_numbers = #tpu.dot_dimension_numbers<[2], [2], [1], [1], [0, 0, 0, 1, 1, 1], [0], [0]>} : vector<1x8x16xf32>, vector<1x8x16xf32>, vector<1x8x8xf32> -> vector<1x8x8xf32>
    "tpu.trace_stop"() : () -> ()
    %68 = vector.extract_strided_slice %62 {offsets = [0, 0, 0], sizes = [1, 8, 8], strides = [1, 1, 1]} : vector<8x8x8xi1> to vector<1x8x8xi1>
    %69 = vector.shape_cast %68 : vector<1x8x8xi1> to vector<8x8xi1>
    %70 = vector.shape_cast %69 : vector<8x8xi1> to vector<1x8x8xi1>
    %cst_34 = arith.constant -1.000000e+09 : f32
    %71 = vector.broadcast %cst_34 : f32 to vector<1x8x8xf32>
    %72 = arith.select %70, %71, %67 : vector<1x8x8xi1>, vector<1x8x8xf32>
    %cst_35 = arith.constant dense<0xFF800000> : vector<1x8xf32>
    %73 = vector.multi_reduction <maximumf>, %72, %cst_35 [2] : vector<1x8x8xf32> to vector<1x8xf32>
    %74 = vector.shape_cast %73 : vector<1x8xf32> to vector<1x8x1xf32>
    %75 = vector.broadcast %74 : vector<1x8x1xf32> to vector<1x8x8xf32>
    %76 = arith.subf %72, %75 : vector<1x8x8xf32>
    %77 = math.exp %76 : vector<1x8x8xf32>
    %cst_36 = arith.constant dense<0.000000e+00> : vector<1x8xf32>
    %78 = vector.multi_reduction <add>, %77, %cst_36 [2] : vector<1x8x8xf32> to vector<1x8xf32>
    %79 = vector.shape_cast %78 : vector<1x8xf32> to vector<1x8x1xf32>
    %80 = tpu.reciprocal %79 {approx = true} : vector<1x8x1xf32> -> vector<1x8x1xf32>
    %81 = arith.mulf %79, %80 : vector<1x8x1xf32>
    %cst_37 = arith.constant 2.000000e+00 : f32
    %82 = vector.broadcast %cst_37 : f32 to vector<1x8x1xf32>
    %83 = arith.subf %82, %81 : vector<1x8x1xf32>
    %84 = arith.mulf %80, %83 : vector<1x8x1xf32>
    %85 = vector.broadcast %84 : vector<1x8x1xf32> to vector<1x8x8xf32>
    %86 = arith.mulf %77, %85 : vector<1x8x8xf32>
    "tpu.trace_start"() <{level = 10 : i32, message = "bqk,bkd->bqd"}> : () -> ()
    %cst_38 = arith.constant dense<0.000000e+00> : vector<1x8x16xf32>
    %87 = tpu.matmul %86, %66, %cst_38 {dimension_numbers = #tpu.dot_dimension_numbers<[2], [1], [1], [2], [0, 0, 0, 1, 1, 2], [0], [0]>} : vector<1x8x8xf32>, vector<1x8x16xf32>, vector<1x8x16xf32> -> vector<1x8x16xf32>
    "tpu.trace_stop"() : () -> ()
    %88 = vector.shape_cast %87 : vector<1x8x16xf32> to vector<8x16xf32>
    %c0_39 = arith.constant 0 : index
    %c0_40 = arith.constant 0 : index
    %89 = vector.load %arg9[%c0_39, %c0_40] : memref<128x128xf32, #tpu.memory_space<vmem>>, vector<16x128xf32>
    %cst_41 = arith.constant dense<0.000000e+00> : vector<8x128xf32>
    %90 = tpu.matmul %88, %89, %cst_41 {dimension_numbers = #tpu.dot_dimension_numbers<[1], [0], [0], [1], [0, 0, 1, 1], [], []>} : vector<8x16xf32>, vector<16x128xf32>, vector<8x128xf32> -> vector<8x128xf32>
    %91 = arith.addf %63, %90 : vector<8x128xf32>
    %92 = vector.extract_strided_slice %57 {offsets = [0, 0, 16], sizes = [1, 8, 16], strides = [1, 1, 1]} : vector<1x8x128xf32> to vector<1x8x16xf32>
    %93 = vector.extract_strided_slice %58 {offsets = [0, 0, 16], sizes = [1, 8, 16], strides = [1, 1, 1]} : vector<1x8x128xf32> to vector<1x8x16xf32>
    %94 = vector.extract_strided_slice %59 {offsets = [0, 0, 16], sizes = [1, 8, 16], strides = [1, 1, 1]} : vector<1x8x128xf32> to vector<1x8x16xf32>
    "tpu.trace_start"() <{level = 10 : i32, message = "bqd,bkd->bqk"}> : () -> ()
    %cst_42 = arith.constant dense<0.000000e+00> : vector<1x8x8xf32>
    %95 = tpu.matmul %92, %93, %cst_42 {dimension_numbers = #tpu.dot_dimension_numbers<[2], [2], [1], [1], [0, 0, 0, 1, 1, 1], [0], [0]>} : vector<1x8x16xf32>, vector<1x8x16xf32>, vector<1x8x8xf32> -> vector<1x8x8xf32>
    "tpu.trace_stop"() : () -> ()
    %96 = vector.extract_strided_slice %62 {offsets = [1, 0, 0], sizes = [1, 8, 8], strides = [1, 1, 1]} : vector<8x8x8xi1> to vector<1x8x8xi1>
    %97 = vector.shape_cast %96 : vector<1x8x8xi1> to vector<8x8xi1>
    %98 = vector.shape_cast %97 : vector<8x8xi1> to vector<1x8x8xi1>
    %cst_43 = arith.constant -1.000000e+09 : f32
    %99 = vector.broadcast %cst_43 : f32 to vector<1x8x8xf32>
    %100 = arith.select %98, %99, %95 : vector<1x8x8xi1>, vector<1x8x8xf32>
    %cst_44 = arith.constant dense<0xFF800000> : vector<1x8xf32>
    %101 = vector.multi_reduction <maximumf>, %100, %cst_44 [2] : vector<1x8x8xf32> to vector<1x8xf32>
    %102 = vector.shape_cast %101 : vector<1x8xf32> to vector<1x8x1xf32>
    %103 = vector.broadcast %102 : vector<1x8x1xf32> to vector<1x8x8xf32>
    %104 = arith.subf %100, %103 : vector<1x8x8xf32>
    %105 = math.exp %104 : vector<1x8x8xf32>
    %cst_45 = arith.constant dense<0.000000e+00> : vector<1x8xf32>
    %106 = vector.multi_reduction <add>, %105, %cst_45 [2] : vector<1x8x8xf32> to vector<1x8xf32>
    %107 = vector.shape_cast %106 : vector<1x8xf32> to vector<1x8x1xf32>
    %108 = tpu.reciprocal %107 {approx = true} : vector<1x8x1xf32> -> vector<1x8x1xf32>
    %109 = arith.mulf %107, %108 : vector<1x8x1xf32>
    %cst_46 = arith.constant 2.000000e+00 : f32
    %110 = vector.broadcast %cst_46 : f32 to vector<1x8x1xf32>
    %111 = arith.subf %110, %109 : vector<1x8x1xf32>
    %112 = arith.mulf %108, %111 : vector<1x8x1xf32>
    %113 = vector.broadcast %112 : vector<1x8x1xf32> to vector<1x8x8xf32>
    %114 = arith.mulf %105, %113 : vector<1x8x8xf32>
    "tpu.trace_start"() <{level = 10 : i32, message = "bqk,bkd->bqd"}> : () -> ()
    %cst_47 = arith.constant dense<0.000000e+00> : vector<1x8x16xf32>
    %115 = tpu.matmul %114, %94, %cst_47 {dimension_numbers = #tpu.dot_dimension_numbers<[2], [1], [1], [2], [0, 0, 0, 1, 1, 2], [0], [0]>} : vector<1x8x8xf32>, vector<1x8x16xf32>, vector<1x8x16xf32> -> vector<1x8x16xf32>
    "tpu.trace_stop"() : () -> ()
    %116 = vector.shape_cast %115 : vector<1x8x16xf32> to vector<8x16xf32>
    %c16 = arith.constant 16 : index
    %c0_48 = arith.constant 0 : index
    %117 = vector.load %arg9[%c16, %c0_48] : memref<128x128xf32, #tpu.memory_space<vmem>>, vector<16x128xf32>
    %cst_49 = arith.constant dense<0.000000e+00> : vector<8x128xf32>
    %118 = tpu.matmul %116, %117, %cst_49 {dimension_numbers = #tpu.dot_dimension_numbers<[1], [0], [0], [1], [0, 0, 1, 1], [], []>} : vector<8x16xf32>, vector<16x128xf32>, vector<8x128xf32> -> vector<8x128xf32>
    %119 = arith.addf %91, %118 : vector<8x128xf32>
    %120 = vector.extract_strided_slice %57 {offsets = [0, 0, 32], sizes = [1, 8, 16], strides = [1, 1, 1]} : vector<1x8x128xf32> to vector<1x8x16xf32>
    %121 = vector.extract_strided_slice %58 {offsets = [0, 0, 32], sizes = [1, 8, 16], strides = [1, 1, 1]} : vector<1x8x128xf32> to vector<1x8x16xf32>
    %122 = vector.extract_strided_slice %59 {offsets = [0, 0, 32], sizes = [1, 8, 16], strides = [1, 1, 1]} : vector<1x8x128xf32> to vector<1x8x16xf32>
    "tpu.trace_start"() <{level = 10 : i32, message = "bqd,bkd->bqk"}> : () -> ()
    %cst_50 = arith.constant dense<0.000000e+00> : vector<1x8x8xf32>
    %123 = tpu.matmul %120, %121, %cst_50 {dimension_numbers = #tpu.dot_dimension_numbers<[2], [2], [1], [1], [0, 0, 0, 1, 1, 1], [0], [0]>} : vector<1x8x16xf32>, vector<1x8x16xf32>, vector<1x8x8xf32> -> vector<1x8x8xf32>
    "tpu.trace_stop"() : () -> ()
    %124 = vector.extract_strided_slice %62 {offsets = [2, 0, 0], sizes = [1, 8, 8], strides = [1, 1, 1]} : vector<8x8x8xi1> to vector<1x8x8xi1>
    %125 = vector.shape_cast %124 : vector<1x8x8xi1> to vector<8x8xi1>
    %126 = vector.shape_cast %125 : vector<8x8xi1> to vector<1x8x8xi1>
    %cst_51 = arith.constant -1.000000e+09 : f32
    %127 = vector.broadcast %cst_51 : f32 to vector<1x8x8xf32>
    %128 = arith.select %126, %127, %123 : vector<1x8x8xi1>, vector<1x8x8xf32>
    %cst_52 = arith.constant dense<0xFF800000> : vector<1x8xf32>
    %129 = vector.multi_reduction <maximumf>, %128, %cst_52 [2] : vector<1x8x8xf32> to vector<1x8xf32>
    %130 = vector.shape_cast %129 : vector<1x8xf32> to vector<1x8x1xf32>
    %131 = vector.broadcast %130 : vector<1x8x1xf32> to vector<1x8x8xf32>
    %132 = arith.subf %128, %131 : vector<1x8x8xf32>
    %133 = math.exp %132 : vector<1x8x8xf32>
    %cst_53 = arith.constant dense<0.000000e+00> : vector<1x8xf32>
    %134 = vector.multi_reduction <add>, %133, %cst_53 [2] : vector<1x8x8xf32> to vector<1x8xf32>
    %135 = vector.shape_cast %134 : vector<1x8xf32> to vector<1x8x1xf32>
    %136 = tpu.reciprocal %135 {approx = true} : vector<1x8x1xf32> -> vector<1x8x1xf32>
    %137 = arith.mulf %135, %136 : vector<1x8x1xf32>
    %cst_54 = arith.constant 2.000000e+00 : f32
    %138 = vector.broadcast %cst_54 : f32 to vector<1x8x1xf32>
    %139 = arith.subf %138, %137 : vector<1x8x1xf32>
    %140 = arith.mulf %136, %139 : vector<1x8x1xf32>
    %141 = vector.broadcast %140 : vector<1x8x1xf32> to vector<1x8x8xf32>
    %142 = arith.mulf %133, %141 : vector<1x8x8xf32>
    "tpu.trace_start"() <{level = 10 : i32, message = "bqk,bkd->bqd"}> : () -> ()
    %cst_55 = arith.constant dense<0.000000e+00> : vector<1x8x16xf32>
    %143 = tpu.matmul %142, %122, %cst_55 {dimension_numbers = #tpu.dot_dimension_numbers<[2], [1], [1], [2], [0, 0, 0, 1, 1, 2], [0], [0]>} : vector<1x8x8xf32>, vector<1x8x16xf32>, vector<1x8x16xf32> -> vector<1x8x16xf32>
    "tpu.trace_stop"() : () -> ()
    %144 = vector.shape_cast %143 : vector<1x8x16xf32> to vector<8x16xf32>
    %c32 = arith.constant 32 : index
    %c0_56 = arith.constant 0 : index
    %145 = vector.load %arg9[%c32, %c0_56] : memref<128x128xf32, #tpu.memory_space<vmem>>, vector<16x128xf32>
    %cst_57 = arith.constant dense<0.000000e+00> : vector<8x128xf32>
    %146 = tpu.matmul %144, %145, %cst_57 {dimension_numbers = #tpu.dot_dimension_numbers<[1], [0], [0], [1], [0, 0, 1, 1], [], []>} : vector<8x16xf32>, vector<16x128xf32>, vector<8x128xf32> -> vector<8x128xf32>
    %147 = arith.addf %119, %146 : vector<8x128xf32>
    %148 = vector.extract_strided_slice %57 {offsets = [0, 0, 48], sizes = [1, 8, 16], strides = [1, 1, 1]} : vector<1x8x128xf32> to vector<1x8x16xf32>
    %149 = vector.extract_strided_slice %58 {offsets = [0, 0, 48], sizes = [1, 8, 16], strides = [1, 1, 1]} : vector<1x8x128xf32> to vector<1x8x16xf32>
    %150 = vector.extract_strided_slice %59 {offsets = [0, 0, 48], sizes = [1, 8, 16], strides = [1, 1, 1]} : vector<1x8x128xf32> to vector<1x8x16xf32>
    "tpu.trace_start"() <{level = 10 : i32, message = "bqd,bkd->bqk"}> : () -> ()
    %cst_58 = arith.constant dense<0.000000e+00> : vector<1x8x8xf32>
    %151 = tpu.matmul %148, %149, %cst_58 {dimension_numbers = #tpu.dot_dimension_numbers<[2], [2], [1], [1], [0, 0, 0, 1, 1, 1], [0], [0]>} : vector<1x8x16xf32>, vector<1x8x16xf32>, vector<1x8x8xf32> -> vector<1x8x8xf32>
    "tpu.trace_stop"() : () -> ()
    %152 = vector.extract_strided_slice %62 {offsets = [3, 0, 0], sizes = [1, 8, 8], strides = [1, 1, 1]} : vector<8x8x8xi1> to vector<1x8x8xi1>
    %153 = vector.shape_cast %152 : vector<1x8x8xi1> to vector<8x8xi1>
    %154 = vector.shape_cast %153 : vector<8x8xi1> to vector<1x8x8xi1>
    %cst_59 = arith.constant -1.000000e+09 : f32
    %155 = vector.broadcast %cst_59 : f32 to vector<1x8x8xf32>
    %156 = arith.select %154, %155, %151 : vector<1x8x8xi1>, vector<1x8x8xf32>
    %cst_60 = arith.constant dense<0xFF800000> : vector<1x8xf32>
    %157 = vector.multi_reduction <maximumf>, %156, %cst_60 [2] : vector<1x8x8xf32> to vector<1x8xf32>
    %158 = vector.shape_cast %157 : vector<1x8xf32> to vector<1x8x1xf32>
    %159 = vector.broadcast %158 : vector<1x8x1xf32> to vector<1x8x8xf32>
    %160 = arith.subf %156, %159 : vector<1x8x8xf32>
    %161 = math.exp %160 : vector<1x8x8xf32>
    %cst_61 = arith.constant dense<0.000000e+00> : vector<1x8xf32>
    %162 = vector.multi_reduction <add>, %161, %cst_61 [2] : vector<1x8x8xf32> to vector<1x8xf32>
    %163 = vector.shape_cast %162 : vector<1x8xf32> to vector<1x8x1xf32>
    %164 = tpu.reciprocal %163 {approx = true} : vector<1x8x1xf32> -> vector<1x8x1xf32>
    %165 = arith.mulf %163, %164 : vector<1x8x1xf32>
    %cst_62 = arith.constant 2.000000e+00 : f32
    %166 = vector.broadcast %cst_62 : f32 to vector<1x8x1xf32>
    %167 = arith.subf %166, %165 : vector<1x8x1xf32>
    %168 = arith.mulf %164, %167 : vector<1x8x1xf32>
    %169 = vector.broadcast %168 : vector<1x8x1xf32> to vector<1x8x8xf32>
    %170 = arith.mulf %161, %169 : vector<1x8x8xf32>
    "tpu.trace_start"() <{level = 10 : i32, message = "bqk,bkd->bqd"}> : () -> ()
    %cst_63 = arith.constant dense<0.000000e+00> : vector<1x8x16xf32>
    %171 = tpu.matmul %170, %150, %cst_63 {dimension_numbers = #tpu.dot_dimension_numbers<[2], [1], [1], [2], [0, 0, 0, 1, 1, 2], [0], [0]>} : vector<1x8x8xf32>, vector<1x8x16xf32>, vector<1x8x16xf32> -> vector<1x8x16xf32>
    "tpu.trace_stop"() : () -> ()
    %172 = vector.shape_cast %171 : vector<1x8x16xf32> to vector<8x16xf32>
    %c48 = arith.constant 48 : index
    %c0_64 = arith.constant 0 : index
    %173 = vector.load %arg9[%c48, %c0_64] : memref<128x128xf32, #tpu.memory_space<vmem>>, vector<16x128xf32>
    %cst_65 = arith.constant dense<0.000000e+00> : vector<8x128xf32>
    %174 = tpu.matmul %172, %173, %cst_65 {dimension_numbers = #tpu.dot_dimension_numbers<[1], [0], [0], [1], [0, 0, 1, 1], [], []>} : vector<8x16xf32>, vector<16x128xf32>, vector<8x128xf32> -> vector<8x128xf32>
    %175 = arith.addf %147, %174 : vector<8x128xf32>
    %176 = vector.extract_strided_slice %57 {offsets = [0, 0, 64], sizes = [1, 8, 16], strides = [1, 1, 1]} : vector<1x8x128xf32> to vector<1x8x16xf32>
    %177 = vector.extract_strided_slice %58 {offsets = [0, 0, 64], sizes = [1, 8, 16], strides = [1, 1, 1]} : vector<1x8x128xf32> to vector<1x8x16xf32>
    %178 = vector.extract_strided_slice %59 {offsets = [0, 0, 64], sizes = [1, 8, 16], strides = [1, 1, 1]} : vector<1x8x128xf32> to vector<1x8x16xf32>
    "tpu.trace_start"() <{level = 10 : i32, message = "bqd,bkd->bqk"}> : () -> ()
    %cst_66 = arith.constant dense<0.000000e+00> : vector<1x8x8xf32>
    %179 = tpu.matmul %176, %177, %cst_66 {dimension_numbers = #tpu.dot_dimension_numbers<[2], [2], [1], [1], [0, 0, 0, 1, 1, 1], [0], [0]>} : vector<1x8x16xf32>, vector<1x8x16xf32>, vector<1x8x8xf32> -> vector<1x8x8xf32>
    "tpu.trace_stop"() : () -> ()
    %180 = vector.extract_strided_slice %62 {offsets = [4, 0, 0], sizes = [1, 8, 8], strides = [1, 1, 1]} : vector<8x8x8xi1> to vector<1x8x8xi1>
    %181 = vector.shape_cast %180 : vector<1x8x8xi1> to vector<8x8xi1>
    %182 = vector.shape_cast %181 : vector<8x8xi1> to vector<1x8x8xi1>
    %cst_67 = arith.constant -1.000000e+09 : f32
    %183 = vector.broadcast %cst_67 : f32 to vector<1x8x8xf32>
    %184 = arith.select %182, %183, %179 : vector<1x8x8xi1>, vector<1x8x8xf32>
    %cst_68 = arith.constant dense<0xFF800000> : vector<1x8xf32>
    %185 = vector.multi_reduction <maximumf>, %184, %cst_68 [2] : vector<1x8x8xf32> to vector<1x8xf32>
    %186 = vector.shape_cast %185 : vector<1x8xf32> to vector<1x8x1xf32>
    %187 = vector.broadcast %186 : vector<1x8x1xf32> to vector<1x8x8xf32>
    %188 = arith.subf %184, %187 : vector<1x8x8xf32>
    %189 = math.exp %188 : vector<1x8x8xf32>
    %cst_69 = arith.constant dense<0.000000e+00> : vector<1x8xf32>
    %190 = vector.multi_reduction <add>, %189, %cst_69 [2] : vector<1x8x8xf32> to vector<1x8xf32>
    %191 = vector.shape_cast %190 : vector<1x8xf32> to vector<1x8x1xf32>
    %192 = tpu.reciprocal %191 {approx = true} : vector<1x8x1xf32> -> vector<1x8x1xf32>
    %193 = arith.mulf %191, %192 : vector<1x8x1xf32>
    %cst_70 = arith.constant 2.000000e+00 : f32
    %194 = vector.broadcast %cst_70 : f32 to vector<1x8x1xf32>
    %195 = arith.subf %194, %193 : vector<1x8x1xf32>
    %196 = arith.mulf %192, %195 : vector<1x8x1xf32>
    %197 = vector.broadcast %196 : vector<1x8x1xf32> to vector<1x8x8xf32>
    %198 = arith.mulf %189, %197 : vector<1x8x8xf32>
    "tpu.trace_start"() <{level = 10 : i32, message = "bqk,bkd->bqd"}> : () -> ()
    %cst_71 = arith.constant dense<0.000000e+00> : vector<1x8x16xf32>
    %199 = tpu.matmul %198, %178, %cst_71 {dimension_numbers = #tpu.dot_dimension_numbers<[2], [1], [1], [2], [0, 0, 0, 1, 1, 2], [0], [0]>} : vector<1x8x8xf32>, vector<1x8x16xf32>, vector<1x8x16xf32> -> vector<1x8x16xf32>
    "tpu.trace_stop"() : () -> ()
    %200 = vector.shape_cast %199 : vector<1x8x16xf32> to vector<8x16xf32>
    %c64 = arith.constant 64 : index
    %c0_72 = arith.constant 0 : index
    %201 = vector.load %arg9[%c64, %c0_72] : memref<128x128xf32, #tpu.memory_space<vmem>>, vector<16x128xf32>
    %cst_73 = arith.constant dense<0.000000e+00> : vector<8x128xf32>
    %202 = tpu.matmul %200, %201, %cst_73 {dimension_numbers = #tpu.dot_dimension_numbers<[1], [0], [0], [1], [0, 0, 1, 1], [], []>} : vector<8x16xf32>, vector<16x128xf32>, vector<8x128xf32> -> vector<8x128xf32>
    %203 = arith.addf %175, %202 : vector<8x128xf32>
    %204 = vector.extract_strided_slice %57 {offsets = [0, 0, 80], sizes = [1, 8, 16], strides = [1, 1, 1]} : vector<1x8x128xf32> to vector<1x8x16xf32>
    %205 = vector.extract_strided_slice %58 {offsets = [0, 0, 80], sizes = [1, 8, 16], strides = [1, 1, 1]} : vector<1x8x128xf32> to vector<1x8x16xf32>
    %206 = vector.extract_strided_slice %59 {offsets = [0, 0, 80], sizes = [1, 8, 16], strides = [1, 1, 1]} : vector<1x8x128xf32> to vector<1x8x16xf32>
    "tpu.trace_start"() <{level = 10 : i32, message = "bqd,bkd->bqk"}> : () -> ()
    %cst_74 = arith.constant dense<0.000000e+00> : vector<1x8x8xf32>
    %207 = tpu.matmul %204, %205, %cst_74 {dimension_numbers = #tpu.dot_dimension_numbers<[2], [2], [1], [1], [0, 0, 0, 1, 1, 1], [0], [0]>} : vector<1x8x16xf32>, vector<1x8x16xf32>, vector<1x8x8xf32> -> vector<1x8x8xf32>
    "tpu.trace_stop"() : () -> ()
    %208 = vector.extract_strided_slice %62 {offsets = [5, 0, 0], sizes = [1, 8, 8], strides = [1, 1, 1]} : vector<8x8x8xi1> to vector<1x8x8xi1>
    %209 = vector.shape_cast %208 : vector<1x8x8xi1> to vector<8x8xi1>
    %210 = vector.shape_cast %209 : vector<8x8xi1> to vector<1x8x8xi1>
    %cst_75 = arith.constant -1.000000e+09 : f32
    %211 = vector.broadcast %cst_75 : f32 to vector<1x8x8xf32>
    %212 = arith.select %210, %211, %207 : vector<1x8x8xi1>, vector<1x8x8xf32>
    %cst_76 = arith.constant dense<0xFF800000> : vector<1x8xf32>
    %213 = vector.multi_reduction <maximumf>, %212, %cst_76 [2] : vector<1x8x8xf32> to vector<1x8xf32>
    %214 = vector.shape_cast %213 : vector<1x8xf32> to vector<1x8x1xf32>
    %215 = vector.broadcast %214 : vector<1x8x1xf32> to vector<1x8x8xf32>
    %216 = arith.subf %212, %215 : vector<1x8x8xf32>
    %217 = math.exp %216 : vector<1x8x8xf32>
    %cst_77 = arith.constant dense<0.000000e+00> : vector<1x8xf32>
    %218 = vector.multi_reduction <add>, %217, %cst_77 [2] : vector<1x8x8xf32> to vector<1x8xf32>
    %219 = vector.shape_cast %218 : vector<1x8xf32> to vector<1x8x1xf32>
    %220 = tpu.reciprocal %219 {approx = true} : vector<1x8x1xf32> -> vector<1x8x1xf32>
    %221 = arith.mulf %219, %220 : vector<1x8x1xf32>
    %cst_78 = arith.constant 2.000000e+00 : f32
    %222 = vector.broadcast %cst_78 : f32 to vector<1x8x1xf32>
    %223 = arith.subf %222, %221 : vector<1x8x1xf32>
    %224 = arith.mulf %220, %223 : vector<1x8x1xf32>
    %225 = vector.broadcast %224 : vector<1x8x1xf32> to vector<1x8x8xf32>
    %226 = arith.mulf %217, %225 : vector<1x8x8xf32>
    "tpu.trace_start"() <{level = 10 : i32, message = "bqk,bkd->bqd"}> : () -> ()
    %cst_79 = arith.constant dense<0.000000e+00> : vector<1x8x16xf32>
    %227 = tpu.matmul %226, %206, %cst_79 {dimension_numbers = #tpu.dot_dimension_numbers<[2], [1], [1], [2], [0, 0, 0, 1, 1, 2], [0], [0]>} : vector<1x8x8xf32>, vector<1x8x16xf32>, vector<1x8x16xf32> -> vector<1x8x16xf32>
    "tpu.trace_stop"() : () -> ()
    %228 = vector.shape_cast %227 : vector<1x8x16xf32> to vector<8x16xf32>
    %c80 = arith.constant 80 : index
    %c0_80 = arith.constant 0 : index
    %229 = vector.load %arg9[%c80, %c0_80] : memref<128x128xf32, #tpu.memory_space<vmem>>, vector<16x128xf32>
    %cst_81 = arith.constant dense<0.000000e+00> : vector<8x128xf32>
    %230 = tpu.matmul %228, %229, %cst_81 {dimension_numbers = #tpu.dot_dimension_numbers<[1], [0], [0], [1], [0, 0, 1, 1], [], []>} : vector<8x16xf32>, vector<16x128xf32>, vector<8x128xf32> -> vector<8x128xf32>
    %231 = arith.addf %203, %230 : vector<8x128xf32>
    %232 = vector.extract_strided_slice %57 {offsets = [0, 0, 96], sizes = [1, 8, 16], strides = [1, 1, 1]} : vector<1x8x128xf32> to vector<1x8x16xf32>
    %233 = vector.extract_strided_slice %58 {offsets = [0, 0, 96], sizes = [1, 8, 16], strides = [1, 1, 1]} : vector<1x8x128xf32> to vector<1x8x16xf32>
    %234 = vector.extract_strided_slice %59 {offsets = [0, 0, 96], sizes = [1, 8, 16], strides = [1, 1, 1]} : vector<1x8x128xf32> to vector<1x8x16xf32>
    "tpu.trace_start"() <{level = 10 : i32, message = "bqd,bkd->bqk"}> : () -> ()
    %cst_82 = arith.constant dense<0.000000e+00> : vector<1x8x8xf32>
    %235 = tpu.matmul %232, %233, %cst_82 {dimension_numbers = #tpu.dot_dimension_numbers<[2], [2], [1], [1], [0, 0, 0, 1, 1, 1], [0], [0]>} : vector<1x8x16xf32>, vector<1x8x16xf32>, vector<1x8x8xf32> -> vector<1x8x8xf32>
    "tpu.trace_stop"() : () -> ()
    %236 = vector.extract_strided_slice %62 {offsets = [6, 0, 0], sizes = [1, 8, 8], strides = [1, 1, 1]} : vector<8x8x8xi1> to vector<1x8x8xi1>
    %237 = vector.shape_cast %236 : vector<1x8x8xi1> to vector<8x8xi1>
    %238 = vector.shape_cast %237 : vector<8x8xi1> to vector<1x8x8xi1>
    %cst_83 = arith.constant -1.000000e+09 : f32
    %239 = vector.broadcast %cst_83 : f32 to vector<1x8x8xf32>
    %240 = arith.select %238, %239, %235 : vector<1x8x8xi1>, vector<1x8x8xf32>
    %cst_84 = arith.constant dense<0xFF800000> : vector<1x8xf32>
    %241 = vector.multi_reduction <maximumf>, %240, %cst_84 [2] : vector<1x8x8xf32> to vector<1x8xf32>
    %242 = vector.shape_cast %241 : vector<1x8xf32> to vector<1x8x1xf32>
    %243 = vector.broadcast %242 : vector<1x8x1xf32> to vector<1x8x8xf32>
    %244 = arith.subf %240, %243 : vector<1x8x8xf32>
    %245 = math.exp %244 : vector<1x8x8xf32>
    %cst_85 = arith.constant dense<0.000000e+00> : vector<1x8xf32>
    %246 = vector.multi_reduction <add>, %245, %cst_85 [2] : vector<1x8x8xf32> to vector<1x8xf32>
    %247 = vector.shape_cast %246 : vector<1x8xf32> to vector<1x8x1xf32>
    %248 = tpu.reciprocal %247 {approx = true} : vector<1x8x1xf32> -> vector<1x8x1xf32>
    %249 = arith.mulf %247, %248 : vector<1x8x1xf32>
    %cst_86 = arith.constant 2.000000e+00 : f32
    %250 = vector.broadcast %cst_86 : f32 to vector<1x8x1xf32>
    %251 = arith.subf %250, %249 : vector<1x8x1xf32>
    %252 = arith.mulf %248, %251 : vector<1x8x1xf32>
    %253 = vector.broadcast %252 : vector<1x8x1xf32> to vector<1x8x8xf32>
    %254 = arith.mulf %245, %253 : vector<1x8x8xf32>
    "tpu.trace_start"() <{level = 10 : i32, message = "bqk,bkd->bqd"}> : () -> ()
    %cst_87 = arith.constant dense<0.000000e+00> : vector<1x8x16xf32>
    %255 = tpu.matmul %254, %234, %cst_87 {dimension_numbers = #tpu.dot_dimension_numbers<[2], [1], [1], [2], [0, 0, 0, 1, 1, 2], [0], [0]>} : vector<1x8x8xf32>, vector<1x8x16xf32>, vector<1x8x16xf32> -> vector<1x8x16xf32>
    "tpu.trace_stop"() : () -> ()
    %256 = vector.shape_cast %255 : vector<1x8x16xf32> to vector<8x16xf32>
    %c96 = arith.constant 96 : index
    %c0_88 = arith.constant 0 : index
    %257 = vector.load %arg9[%c96, %c0_88] : memref<128x128xf32, #tpu.memory_space<vmem>>, vector<16x128xf32>
    %cst_89 = arith.constant dense<0.000000e+00> : vector<8x128xf32>
    %258 = tpu.matmul %256, %257, %cst_89 {dimension_numbers = #tpu.dot_dimension_numbers<[1], [0], [0], [1], [0, 0, 1, 1], [], []>} : vector<8x16xf32>, vector<16x128xf32>, vector<8x128xf32> -> vector<8x128xf32>
    %259 = arith.addf %231, %258 : vector<8x128xf32>
    %260 = vector.extract_strided_slice %57 {offsets = [0, 0, 112], sizes = [1, 8, 16], strides = [1, 1, 1]} : vector<1x8x128xf32> to vector<1x8x16xf32>
    %261 = vector.extract_strided_slice %58 {offsets = [0, 0, 112], sizes = [1, 8, 16], strides = [1, 1, 1]} : vector<1x8x128xf32> to vector<1x8x16xf32>
    %262 = vector.extract_strided_slice %59 {offsets = [0, 0, 112], sizes = [1, 8, 16], strides = [1, 1, 1]} : vector<1x8x128xf32> to vector<1x8x16xf32>
    "tpu.trace_start"() <{level = 10 : i32, message = "bqd,bkd->bqk"}> : () -> ()
    %cst_90 = arith.constant dense<0.000000e+00> : vector<1x8x8xf32>
    %263 = tpu.matmul %260, %261, %cst_90 {dimension_numbers = #tpu.dot_dimension_numbers<[2], [2], [1], [1], [0, 0, 0, 1, 1, 1], [0], [0]>} : vector<1x8x16xf32>, vector<1x8x16xf32>, vector<1x8x8xf32> -> vector<1x8x8xf32>
    "tpu.trace_stop"() : () -> ()
    %264 = vector.extract_strided_slice %62 {offsets = [7, 0, 0], sizes = [1, 8, 8], strides = [1, 1, 1]} : vector<8x8x8xi1> to vector<1x8x8xi1>
    %265 = vector.shape_cast %264 : vector<1x8x8xi1> to vector<8x8xi1>
    %266 = vector.shape_cast %265 : vector<8x8xi1> to vector<1x8x8xi1>
    %cst_91 = arith.constant -1.000000e+09 : f32
    %267 = vector.broadcast %cst_91 : f32 to vector<1x8x8xf32>
    %268 = arith.select %266, %267, %263 : vector<1x8x8xi1>, vector<1x8x8xf32>
    %cst_92 = arith.constant dense<0xFF800000> : vector<1x8xf32>
    %269 = vector.multi_reduction <maximumf>, %268, %cst_92 [2] : vector<1x8x8xf32> to vector<1x8xf32>
    %270 = vector.shape_cast %269 : vector<1x8xf32> to vector<1x8x1xf32>
    %271 = vector.broadcast %270 : vector<1x8x1xf32> to vector<1x8x8xf32>
    %272 = arith.subf %268, %271 : vector<1x8x8xf32>
    %273 = math.exp %272 : vector<1x8x8xf32>
    %cst_93 = arith.constant dense<0.000000e+00> : vector<1x8xf32>
    %274 = vector.multi_reduction <add>, %273, %cst_93 [2] : vector<1x8x8xf32> to vector<1x8xf32>
    %275 = vector.shape_cast %274 : vector<1x8xf32> to vector<1x8x1xf32>
    %276 = tpu.reciprocal %275 {approx = true} : vector<1x8x1xf32> -> vector<1x8x1xf32>
    %277 = arith.mulf %275, %276 : vector<1x8x1xf32>
    %cst_94 = arith.constant 2.000000e+00 : f32
    %278 = vector.broadcast %cst_94 : f32 to vector<1x8x1xf32>
    %279 = arith.subf %278, %277 : vector<1x8x1xf32>
    %280 = arith.mulf %276, %279 : vector<1x8x1xf32>
    %281 = vector.broadcast %280 : vector<1x8x1xf32> to vector<1x8x8xf32>
    %282 = arith.mulf %273, %281 : vector<1x8x8xf32>
    "tpu.trace_start"() <{level = 10 : i32, message = "bqk,bkd->bqd"}> : () -> ()
    %cst_95 = arith.constant dense<0.000000e+00> : vector<1x8x16xf32>
    %283 = tpu.matmul %282, %262, %cst_95 {dimension_numbers = #tpu.dot_dimension_numbers<[2], [1], [1], [2], [0, 0, 0, 1, 1, 2], [0], [0]>} : vector<1x8x8xf32>, vector<1x8x16xf32>, vector<1x8x16xf32> -> vector<1x8x16xf32>
    "tpu.trace_stop"() : () -> ()
    %284 = vector.shape_cast %283 : vector<1x8x16xf32> to vector<8x16xf32>
    %c112 = arith.constant 112 : index
    %c0_96 = arith.constant 0 : index
    %285 = vector.load %arg9[%c112, %c0_96] : memref<128x128xf32, #tpu.memory_space<vmem>>, vector<16x128xf32>
    %cst_97 = arith.constant dense<0.000000e+00> : vector<8x128xf32>
    %286 = tpu.matmul %284, %285, %cst_97 {dimension_numbers = #tpu.dot_dimension_numbers<[1], [0], [0], [1], [0, 0, 1, 1], [], []>} : vector<8x16xf32>, vector<16x128xf32>, vector<8x128xf32> -> vector<8x128xf32>
    %287 = arith.addf %259, %286 : vector<8x128xf32>
    %288 = arith.addf %1, %287 : vector<8x128xf32>
    %c0_98 = arith.constant 0 : index
    %c0_99 = arith.constant 0 : index
    %289 = vector.load %arg10[%c0_98, %c0_99] : memref<1x128xf32, #tpu.memory_space<vmem>>, vector<1x128xf32>
    %290 = vector.shape_cast %289 : vector<1x128xf32> to vector<128xf32>
    %291 = vector.shape_cast %290 : vector<128xf32> to vector<1x128xf32>
    %292 = vector.broadcast %291 : vector<1x128xf32> to vector<8x128xf32>
    %293 = arith.addf %288, %292 : vector<8x128xf32>
    %c0_100 = arith.constant 0 : index
    %c0_101 = arith.constant 0 : index
    %294 = vector.load %arg17[%c0_100, %c0_101] : memref<1x128xf32, #tpu.memory_space<vmem>>, vector<1x128xf32>
    %295 = vector.shape_cast %294 : vector<1x128xf32> to vector<128xf32>
    %c0_102 = arith.constant 0 : index
    %c0_103 = arith.constant 0 : index
    %296 = vector.load %arg18[%c0_102, %c0_103] : memref<1x128xf32, #tpu.memory_space<vmem>>, vector<1x128xf32>
    %297 = vector.shape_cast %296 : vector<1x128xf32> to vector<128xf32>
    %cst_104 = arith.constant dense<0.000000e+00> : vector<8xf32>
    %298 = vector.multi_reduction <add>, %293, %cst_104 [1] : vector<8x128xf32> to vector<8xf32>
    %299 = vector.shape_cast %298 : vector<8xf32> to vector<8x1xf32>
    %cst_105 = arith.constant 1.280000e+02 : f32
    %300 = vector.broadcast %cst_105 : f32 to vector<8x1xf32>
    %301 = arith.divf %299, %300 : vector<8x1xf32>
    %302 = arith.mulf %293, %293 : vector<8x128xf32>
    %cst_106 = arith.constant dense<0.000000e+00> : vector<8xf32>
    %303 = vector.multi_reduction <add>, %302, %cst_106 [1] : vector<8x128xf32> to vector<8xf32>
    %304 = vector.shape_cast %303 : vector<8xf32> to vector<8x1xf32>
    %cst_107 = arith.constant 1.280000e+02 : f32
    %305 = vector.broadcast %cst_107 : f32 to vector<8x1xf32>
    %306 = arith.divf %304, %305 : vector<8x1xf32>
    %307 = arith.mulf %301, %301 : vector<8x1xf32>
    %308 = arith.subf %306, %307 : vector<8x1xf32>
    %cst_108 = arith.constant 1.00787401 : f32
    %309 = vector.broadcast %cst_108 : f32 to vector<8x1xf32>
    %310 = arith.mulf %308, %309 : vector<8x1xf32>
    %cst_109 = arith.constant 0.000000e+00 : f32
    %311 = vector.broadcast %cst_109 : f32 to vector<8x1xf32>
    %312 = arith.maximumf %310, %311 : vector<8x1xf32>
    %313 = math.sqrt %312 : vector<8x1xf32>
    %314 = vector.broadcast %301 : vector<8x1xf32> to vector<8x128xf32>
    %315 = arith.subf %293, %314 : vector<8x128xf32>
    %316 = vector.shape_cast %295 : vector<128xf32> to vector<1x128xf32>
    %317 = vector.broadcast %316 : vector<1x128xf32> to vector<8x128xf32>
    %318 = arith.mulf %317, %315 : vector<8x128xf32>
    %cst_110 = arith.constant 9.99999997E-7 : f32
    %319 = vector.broadcast %cst_110 : f32 to vector<8x1xf32>
    %320 = arith.addf %319, %313 : vector<8x1xf32>
    %321 = vector.broadcast %320 : vector<8x1xf32> to vector<8x128xf32>
    %322 = arith.divf %318, %321 : vector<8x128xf32>
    %323 = vector.shape_cast %297 : vector<128xf32> to vector<1x128xf32>
    %324 = vector.broadcast %323 : vector<1x128xf32> to vector<8x128xf32>
    %325 = arith.addf %322, %324 : vector<8x128xf32>
    %c0_111 = arith.constant 0 : index
    %c0_112 = arith.constant 0 : index
    %326 = vector.load %arg11[%c0_111, %c0_112] : memref<128x64xf32, #tpu.memory_space<vmem>>, vector<128x64xf32>
    %cst_113 = arith.constant dense<0.000000e+00> : vector<8x64xf32>
    %327 = tpu.matmul %325, %326, %cst_113 {dimension_numbers = #tpu.dot_dimension_numbers<[1], [0], [0], [1], [0, 0, 1, 1], [], []>} : vector<8x128xf32>, vector<128x64xf32>, vector<8x64xf32> -> vector<8x64xf32>
    %c0_114 = arith.constant 0 : index
    %c0_115 = arith.constant 0 : index
    %328 = vector.load %arg12[%c0_114, %c0_115] : memref<1x64xf32, #tpu.memory_space<vmem>>, vector<1x64xf32>
    %329 = vector.shape_cast %328 : vector<1x64xf32> to vector<64xf32>
    %330 = vector.shape_cast %329 : vector<64xf32> to vector<1x64xf32>
    %331 = vector.broadcast %330 : vector<1x64xf32> to vector<8x64xf32>
    %332 = arith.addf %327, %331 : vector<8x64xf32>
    %cst_116 = arith.constant 0.000000e+00 : f32
    %333 = vector.broadcast %cst_116 : f32 to vector<8x64xf32>
    %334 = arith.maximumf %332, %333 : vector<8x64xf32>
    %c0_117 = arith.constant 0 : index
    %c0_118 = arith.constant 0 : index
    %335 = vector.load %arg13[%c0_117, %c0_118] : memref<64x128xf32, #tpu.memory_space<vmem>>, vector<64x128xf32>
    %cst_119 = arith.constant dense<0.000000e+00> : vector<8x128xf32>
    %336 = tpu.matmul %334, %335, %cst_119 {dimension_numbers = #tpu.dot_dimension_numbers<[1], [0], [0], [1], [0, 0, 1, 1], [], []>} : vector<8x64xf32>, vector<64x128xf32>, vector<8x128xf32> -> vector<8x128xf32>
    %c0_120 = arith.constant 0 : index
    %c0_121 = arith.constant 0 : index
    %337 = vector.load %arg14[%c0_120, %c0_121] : memref<1x128xf32, #tpu.memory_space<vmem>>, vector<1x128xf32>
    %338 = vector.shape_cast %337 : vector<1x128xf32> to vector<128xf32>
    %339 = vector.shape_cast %338 : vector<128xf32> to vector<1x128xf32>
    %340 = vector.broadcast %339 : vector<1x128xf32> to vector<8x128xf32>
    %341 = arith.addf %336, %340 : vector<8x128xf32>
    %342 = arith.addf %293, %341 : vector<8x128xf32>
    %343 = vector.shape_cast %342 : vector<8x128xf32> to vector<1x8x128xf32>
    %c0_122 = arith.constant 0 : index
    %c0_123 = arith.constant 0 : index
    %c0_124 = arith.constant 0 : index
    %344 = vector.load %arg19[%c0_122, %c0_123, %c0_124] : memref<1x8x128xf32, #tpu.memory_space<vmem>>, vector<1x8x128xf32>
    tpu.vector_store %arg19[%c0_122, %c0_123, %c0_124], %343 {strides = array<i32>} : memref<1x8x128xf32, #tpu.memory_space<vmem>>, vector<1x8x128xf32>,
    return
  }
  func.func @transform_0(%arg0: i32) -> (i32, i32, i32) {
    %c0_i32 = arith.constant 0 : i32
    %c0_i32_0 = arith.constant 0 : i32
    %c0_i32_1 = arith.constant 0 : i32
    return %arg0, %c0_i32, %c0_i32_0 : i32, i32, i32
  }
  func.func @transform_1(%arg0: i32) -> (i32, i32, i32) {
    %c0_i32 = arith.constant 0 : i32
    %c0_i32_0 = arith.constant 0 : i32
    %c0_i32_1 = arith.constant 0 : i32
    %c0_i32_2 = arith.constant 0 : i32
    return %c0_i32, %c0_i32_0, %c0_i32_1 : i32, i32, i32
  }
  func.func @transform_2(%arg0: i32) -> (i32, i32) {
    %c0_i32 = arith.constant 0 : i32
    %c0_i32_0 = arith.constant 0 : i32
    %c0_i32_1 = arith.constant 0 : i32
    return %c0_i32, %c0_i32_0 : i32, i32
  }
  func.func @transform_3(%arg0: i32) -> (i32, i32) {
    %c0_i32 = arith.constant 0 : i32
    %c0_i32_0 = arith.constant 0 : i32
    %c0_i32_1 = arith.constant 0 : i32
    return %c0_i32, %c0_i32_0 : i32, i32
  }
  func.func @transform_4(%arg0: i32) -> (i32, i32) {
    %c0_i32 = arith.constant 0 : i32
    %c0_i32_0 = arith.constant 0 : i32
    %c0_i32_1 = arith.constant 0 : i32
    return %c0_i32, %c0_i32_0 : i32, i32
  }
  func.func @transform_5(%arg0: i32) -> (i32, i32) {
    %c0_i32 = arith.constant 0 : i32
    %c0_i32_0 = arith.constant 0 : i32
    %c0_i32_1 = arith.constant 0 : i32
    return %c0_i32, %c0_i32_0 : i32, i32
  }
  func.func @transform_6(%arg0: i32) -> (i32, i32) {
    %c0_i32 = arith.constant 0 : i32
    %c0_i32_0 = arith.constant 0 : i32
    %c0_i32_1 = arith.constant 0 : i32
    return %c0_i32, %c0_i32_0 : i32, i32
  }
  func.func @transform_7(%arg0: i32) -> (i32, i32) {
    %c0_i32 = arith.constant 0 : i32
    %c0_i32_0 = arith.constant 0 : i32
    %c0_i32_1 = arith.constant 0 : i32
    return %c0_i32, %c0_i32_0 : i32, i32
  }
  func.func @transform_8(%arg0: i32) -> (i32, i32) {
    %c0_i32 = arith.constant 0 : i32
    %c0_i32_0 = arith.constant 0 : i32
    %c0_i32_1 = arith.constant 0 : i32
    return %c0_i32, %c0_i32_0 : i32, i32
  }
  func.func @transform_9(%arg0: i32) -> (i32, i32) {
    %c0_i32 = arith.constant 0 : i32
    %c0_i32_0 = arith.constant 0 : i32
    %c0_i32_1 = arith.constant 0 : i32
    return %c0_i32, %c0_i32_0 : i32, i32
  }
  func.func @transform_10(%arg0: i32) -> (i32, i32) {
    %c0_i32 = arith.constant 0 : i32
    %c0_i32_0 = arith.constant 0 : i32
    %c0_i32_1 = arith.constant 0 : i32
    return %c0_i32, %c0_i32_0 : i32, i32
  }
  func.func @transform_11(%arg0: i32) -> (i32, i32) {
    %c0_i32 = arith.constant 0 : i32
    %c0_i32_0 = arith.constant 0 : i32
    %c0_i32_1 = arith.constant 0 : i32
    return %c0_i32, %c0_i32_0 : i32, i32
  }
  func.func @transform_12(%arg0: i32) -> (i32, i32) {
    %c0_i32 = arith.constant 0 : i32
    %c0_i32_0 = arith.constant 0 : i32
    %c0_i32_1 = arith.constant 0 : i32
    return %c0_i32, %c0_i32_0 : i32, i32
  }
  func.func @transform_13(%arg0: i32) -> (i32, i32) {
    %c0_i32 = arith.constant 0 : i32
    %c0_i32_0 = arith.constant 0 : i32
    %c0_i32_1 = arith.constant 0 : i32
    return %c0_i32, %c0_i32_0 : i32, i32
  }
  func.func @transform_14(%arg0: i32) -> (i32, i32) {
    %c0_i32 = arith.constant 0 : i32
    %c0_i32_0 = arith.constant 0 : i32
    %c0_i32_1 = arith.constant 0 : i32
    return %c0_i32, %c0_i32_0 : i32, i32
  }
  func.func @transform_15(%arg0: i32) -> (i32, i32) {
    %c0_i32 = arith.constant 0 : i32
    %c0_i32_0 = arith.constant 0 : i32
    %c0_i32_1 = arith.constant 0 : i32
    return %c0_i32, %c0_i32_0 : i32, i32
  }
  func.func @transform_16(%arg0: i32) -> (i32, i32) {
    %c0_i32 = arith.constant 0 : i32
    %c0_i32_0 = arith.constant 0 : i32
    %c0_i32_1 = arith.constant 0 : i32
    return %c0_i32, %c0_i32_0 : i32, i32
  }
  func.func @transform_17(%arg0: i32) -> (i32, i32) {
    %c0_i32 = arith.constant 0 : i32
    %c0_i32_0 = arith.constant 0 : i32
    %c0_i32_1 = arith.constant 0 : i32
    return %c0_i32, %c0_i32_0 : i32, i32
  }
  func.func @transform_18(%arg0: i32) -> (i32, i32, i32) {
    %c0_i32 = arith.constant 0 : i32
    %c0_i32_0 = arith.constant 0 : i32
    %c0_i32_1 = arith.constant 0 : i32
    return %arg0, %c0_i32, %c0_i32_0 : i32, i32, i32
  }
}

</mosaic_0001>

<llo_original>
// kernel: tpu_custom_call.1
$region0: #{tpu_custom_call.1}
  #allocation0 [shape = 'u32[]', space=smem, size = 0x4, offset = 0x4, fixed_abs, tag = 'smem constant byte address 0x4 - core index']
  #allocation1 [shape = 'u32[72,128]{1,0:T(1,128)}', space=vmem, size = 0x9000, scoped, tag = 'internal scratch']
  %s0 = inlined_call_operand.hbm [shape: f32[2,8,128], index: 0, kind: input, shape index: {}]
  %s1 = inlined_call_operand.vmem [shape: f32[8,8,8], index: 1, kind: input, shape index: {}]
  %s2 = inlined_call_operand.vmem [shape: f32[128,128], index: 2, kind: input, shape index: {}]
  %s3 = inlined_call_operand.vmem [shape: f32[1,128], index: 3, kind: input, shape index: {}]
  %s4 = inlined_call_operand.hbm [shape: f32[128,128], index: 4, kind: input, shape index: {}]
  %s5 = inlined_call_operand.vmem [shape: f32[1,128], index: 5, kind: input, shape index: {}]
  %s6 = inlined_call_operand.hbm [shape: f32[128,128], index: 6, kind: input, shape index: {}]
  %s7 = inlined_call_operand.vmem [shape: f32[1,128], index: 7, kind: input, shape index: {}]
  %s8 = inlined_call_operand.hbm [shape: f32[128,128], index: 8, kind: input, shape index: {}]
  %s9 = inlined_call_operand.vmem [shape: f32[1,128], index: 9, kind: input, shape index: {}]
  %s10 = inlined_call_operand.vmem [shape: f32[128,64], index: 10, kind: input, shape index: {}]
  %s11 = inlined_call_operand.vmem [shape: f32[1,64], index: 11, kind: input, shape index: {}]
  %s12 = inlined_call_operand.hbm [shape: f32[64,128], index: 12, kind: input, shape index: {}]
  %s13 = inlined_call_operand.vmem [shape: f32[1,128], index: 13, kind: input, shape index: {}]
  %s14 = inlined_call_operand.vmem [shape: f32[1,128], index: 14, kind: input, shape index: {}]
  %s15 = inlined_call_operand.vmem [shape: f32[1,128], index: 15, kind: input, shape index: {}]
  %s16 = inlined_call_operand.vmem [shape: f32[1,128], index: 16, kind: input, shape index: {}]
  %s17 = inlined_call_operand.vmem [shape: f32[1,128], index: 17, kind: input, shape index: {}]
  %s18 = inlined_call_operand.hbm [shape: f32[2,8,128], index: 18, kind: output, shape index: {}]
  %s19 = sld [smem:[#allocation0]]
  $region125: #{tpu_custom_call.1} parent=0
    _
  %s21 = ssub.s32 1, %s19
  %s22 = scalar_select 0, %s21, %s19
  $region1: #{tpu_custom_call.1} parent=0
    #allocation2 [shape = 'u8[8192]{0}', space=vmem, size = 0x2000, scoped, tag = 'input window, operand 0']
    #allocation3 [shape = 's32[2]{0}', space=sflag, size = 0x8, scoped, tag = 'scoped memory for tpu_custom_call.1']
    #allocation4 [shape = 's32[2]{0}', space=sflag, size = 0x8, scoped, tag = 'scoped memory for tpu_custom_call.1']
    #allocation5 [shape = 'u8[65536]{0}', space=vmem, size = 0x10000, scoped, tag = 'input window, operand 4, single buffered']
    #allocation6 [shape = 's32[1]{0}', space=sflag, size = 0x4, scoped, tag = 'scoped memory for tpu_custom_call.1']
    #allocation7 [shape = 'u8[65536]{0}', space=vmem, size = 0x10000, scoped, tag = 'input window, operand 6, single buffered']
    #allocation8 [shape = 'u8[65536]{0}', space=vmem, size = 0x10000, scoped, tag = 'input window, operand 8, single buffered']
    #allocation9 [shape = 's32[1]{0}', space=sflag, size = 0x4, scoped, tag = 'scoped memory for tpu_custom_call.1']
    #allocation10 [shape = 'u8[32768]{0}', space=vmem, size = 0x8000, scoped, tag = 'input window, operand 12, single buffered']
    #allocation11 [shape = 'u8[8192]{0}', space=vmem, size = 0x2000, scoped, tag = 'output window, operand 0']
    %23 = vsyncpa [#allocation3], 0
    %s24 = scalar_lea.sflag [#allocation3], 1
    %25 = vsyncpa %s24, 0
    %26 = vsyncpa [#allocation6], 0
    %27 = vsyncpa [#allocation9], 0
    %28 = vsyncpa [#allocation4], 0
    %s29 = scalar_lea.sflag [#allocation4], 1
    %30 = vsyncpa %s29, 0
    loop: start=0, step=1, limit=4
    $region2: #{tpu_custom_call.1} parent=1 // loop_pre_header
      _
    $region3: #{tpu_custom_call.1} parent=1 // loop_header
      %s32 = sphi 0, %s36
      %p33 = scmp.ge.s32.totalorder %s32, 4
      %s42 = sphi 0, %s44
      %s45 = sphi 0, %s42
      %s46 = sphi 0, %s45
      %s62 = sphi 0, %s46
      %s66 = sphi 0, %s66
      %s68 = sphi 0, %s66
      %s69 = sphi 0, %s68
      %s83 = sphi 0, %s69
      %s87 = sphi 0, %s87
      %s89 = sphi 0, %s87
      %s90 = sphi 0, %s89
      %s104 = sphi 0, %s90
      %s108 = sphi 0, %s108
      %s110 = sphi 0, %s108
      %s111 = sphi 0, %s110
      %s125 = sphi 0, %s111
      %s129 = sphi 0, %s129
      %s131 = sphi 0, %s129
      %s132 = sphi 0, %s131
      %s146 = sphi 0, %s132
      %s150 = sphi 0, %s150
      %s152 = sphi 0, %s150
      %s153 = sphi 0, %s152
      %s167 = sphi 0, %s153
      %s171 = sphi 0, %s171
      %s173 = sphi 0, %s171
      %s174 = sphi 0, %s173
      %s188 = sphi 0, %s174
      %s192 = sphi 0, %s192
      %s194 = sphi 0, %s192
      %s195 = sphi 0, %s194
      %s209 = sphi 0, %s195
      %s213 = sphi 0, %s213
      %s215 = sphi 0, %s213
      %s216 = sphi 0, %s215
      %s230 = sphi 0, %s216
      %s234 = sphi 0, %s234
      %s236 = sphi 0, %s234
      %s237 = sphi 0, %s236
      %s251 = sphi 0, %s237
      %s255 = sphi 0, %s255
      %s257 = sphi 0, %s255
      %s258 = sphi 0, %s257
      %s272 = sphi 0, %s258
      %s276 = sphi 0, %s276
      %s278 = sphi 0, %s276
      %s279 = sphi 0, %s278
      %s293 = sphi 0, %s279
      %s297 = sphi 0, %s297
      %s299 = sphi 0, %s297
      %s300 = sphi 0, %s299
      %s314 = sphi 0, %s300
      %s318 = sphi 0, %s318
      %s320 = sphi 0, %s318
      %s321 = sphi 0, %s320
      %s335 = sphi 0, %s321
      %s339 = sphi 0, %s339
      %s341 = sphi 0, %s339
      %s342 = sphi 0, %s341
      %s356 = sphi 0, %s342
      %s360 = sphi 0, %s360
      %s362 = sphi 0, %s360
      %s363 = sphi 0, %s362
      %s377 = sphi 0, %s363
      %s381 = sphi 0, %s381
      %s383 = sphi 0, %s381
      %s384 = sphi 0, %s383
      %s398 = sphi 0, %s384
      %s402 = sphi 0, %s402
      %s404 = sphi 0, %s402
      %s405 = sphi 0, %s404
      %s419 = sphi 0, %s405
      %s425 = sphi 0, %s427
      %s428 = sphi 0, %s425
      %s429 = sphi 0, %s428
      %s445 = sphi 0, %s429
    $region4: #{tpu_custom_call.1} parent=1 // loop_header_branch
      %35 = sbr.rel (%p33) target = $region8
    $region5: #{tpu_custom_call.1} parent=1 // loop_body
      %s37 = ssub.s32 %s32, 1
      %s38 = ssub.s32 %s32, 2
      %s39 = sadd.s32 %s32, 1
      %s40 = ssub.s32 %s32, %s39
      %p41 = scmp.eq.s32.totalorder %s40, 0
      %s43 = sadd.s32 %s42, 1
      %s44 = scalar_select %p41, %s42, %s43
      %p47 = pneg %p41
      %p48 = scmp.eq.s32.totalorder %s32, 1
      %p49 = por %p47, %p48
      %p50 = scmp.ne.s32.totalorder %s42, %s45
      %p51 = scmp.eq.s32.totalorder %s32, 0
      %p52 = por %p50, %p51
      %p53 = scmp.ne.s32.totalorder %s42, %s45
      %p54 = scmp.eq.s32.totalorder %s37, 1
      %p55 = por %p53, %p54
      %p56 = scmp.ne.s32.totalorder %s45, %s46
      %p57 = scmp.eq.s32.totalorder %s37, 0
      %p58 = por %p56, %p57
      %p59 = scmp.ne.s32.totalorder %s45, %s46
      %p60 = scmp.eq.s32.totalorder %s38, 1
      %p61 = por %p59, %p60
      %p63 = scmp.ne.s32.totalorder %s46, %s62
      %p64 = scmp.eq.s32.totalorder %s38, 0
      %p65 = por %p63, %p64
      %s67 = sadd.s32 %s66, 1
      %p70 = scmp.eq.s32.totalorder %s32, 1
      %p71 = scmp.ne.s32.totalorder %s66, %s68
      %p72 = scmp.eq.s32.totalorder %s32, 0
      %p73 = por %p71, %p72
      %p74 = scmp.ne.s32.totalorder %s66, %s68
      %p75 = scmp.eq.s32.totalorder %s37, 1
      %p76 = por %p74, %p75
      %p77 = scmp.ne.s32.totalorder %s68, %s69
      %p78 = scmp.eq.s32.totalorder %s37, 0
      %p79 = por %p77, %p78
      %p80 = scmp.ne.s32.totalorder %s68, %s69
      %p81 = scmp.eq.s32.totalorder %s38, 1
      %p82 = por %p80, %p81
      %p84 = scmp.ne.s32.totalorder %s69, %s83
      %p85 = scmp.eq.s32.totalorder %s38, 0
      %p86 = por %p84, %p85
      %s88 = sadd.s32 %s87, 1
      %p91 = scmp.eq.s32.totalorder %s32, 1
      %p92 = scmp.ne.s32.totalorder %s87, %s89
      %p93 = scmp.eq.s32.totalorder %s32, 0
      %p94 = por %p92, %p93
      %p95 = scmp.ne.s32.totalorder %s87, %s89
      %p96 = scmp.eq.s32.totalorder %s37, 1
      %p97 = por %p95, %p96
      %p98 = scmp.ne.s32.totalorder %s89, %s90
      %p99 = scmp.eq.s32.totalorder %s37, 0
      %p100 = por %p98, %p99
      %p101 = scmp.ne.s32.totalorder %s89, %s90
      %p102 = scmp.eq.s32.totalorder %s38, 1
      %p103 = por %p101, %p102
      %p105 = scmp.ne.s32.totalorder %s90, %s104
      %p106 = scmp.eq.s32.totalorder %s38, 0
      %p107 = por %p105, %p106
      %s109 = sadd.s32 %s108, 1
      %p112 = scmp.eq.s32.totalorder %s32, 1
      %p113 = scmp.ne.s32.totalorder %s108, %s110
      %p114 = scmp.eq.s32.totalorder %s32, 0
      %p115 = por %p113, %p114
      %p116 = scmp.ne.s32.totalorder %s108, %s110
      %p117 = scmp.eq.s32.totalorder %s37, 1
      %p118 = por %p116, %p117
      %p119 = scmp.ne.s32.totalorder %s110, %s111
      %p120 = scmp.eq.s32.totalorder %s37, 0
      %p121 = por %p119, %p120
      %p122 = scmp.ne.s32.totalorder %s110, %s111
      %p123 = scmp.eq.s32.totalorder %s38, 1
      %p124 = por %p122, %p123
      %p126 = scmp.ne.s32.totalorder %s111, %s125
      %p127 = scmp.eq.s32.totalorder %s38, 0
      %p128 = por %p126, %p127
      %s130 = sadd.s32 %s129, 1
      %p133 = scmp.eq.s32.totalorder %s32, 1
      %p134 = scmp.ne.s32.totalorder %s129, %s131
      %p135 = scmp.eq.s32.totalorder %s32, 0
      %p136 = por %p134, %p135
      %p137 = scmp.ne.s32.totalorder %s129, %s131
      %p138 = scmp.eq.s32.totalorder %s37, 1
      %p139 = por %p137, %p138
      %p140 = scmp.ne.s32.totalorder %s131, %s132
      %p141 = scmp.eq.s32.totalorder %s37, 0
      %p142 = por %p140, %p141
      %p143 = scmp.ne.s32.totalorder %s131, %s132
      %p144 = scmp.eq.s32.totalorder %s38, 1
      %p145 = por %p143, %p144
      %p147 = scmp.ne.s32.totalorder %s132, %s146
      %p148 = scmp.eq.s32.totalorder %s38, 0
      %p149 = por %p147, %p148
      %s151 = sadd.s32 %s150, 1
      %p154 = scmp.eq.s32.totalorder %s32, 1
      %p155 = scmp.ne.s32.totalorder %s150, %s152
      %p156 = scmp.eq.s32.totalorder %s32, 0
      %p157 = por %p155, %p156
      %p158 = scmp.ne.s32.totalorder %s150, %s152
      %p159 = scmp.eq.s32.totalorder %s37, 1
      %p160 = por %p158, %p159
      %p161 = scmp.ne.s32.totalorder %s152, %s153
      %p162 = scmp.eq.s32.totalorder %s37, 0
      %p163 = por %p161, %p162
      %p164 = scmp.ne.s32.totalorder %s152, %s153
      %p165 = scmp.eq.s32.totalorder %s38, 1
      %p166 = por %p164, %p165
      %p168 = scmp.ne.s32.totalorder %s153, %s167
      %p169 = scmp.eq.s32.totalorder %s38, 0
      %p170 = por %p168, %p169
      %s172 = sadd.s32 %s171, 1
      %p175 = scmp.eq.s32.totalorder %s32, 1
      %p176 = scmp.ne.s32.totalorder %s171, %s173
      %p177 = scmp.eq.s32.totalorder %s32, 0
      %p178 = por %p176, %p177
      %p179 = scmp.ne.s32.totalorder %s171, %s173
      %p180 = scmp.eq.s32.totalorder %s37, 1
      %p181 = por %p179, %p180
      %p182 = scmp.ne.s32.totalorder %s173, %s174
      %p183 = scmp.eq.s32.totalorder %s37, 0
      %p184 = por %p182, %p183
      %p185 = scmp.ne.s32.totalorder %s173, %s174
      %p186 = scmp.eq.s32.totalorder %s38, 1
      %p187 = por %p185, %p186
      %p189 = scmp.ne.s32.totalorder %s174, %s188
      %p190 = scmp.eq.s32.totalorder %s38, 0
      %p191 = por %p189, %p190
      %s193 = sadd.s32 %s192, 1
      %p196 = scmp.eq.s32.totalorder %s32, 1
      %p197 = scmp.ne.s32.totalorder %s192, %s194
      %p198 = scmp.eq.s32.totalorder %s32, 0
      %p199 = por %p197, %p198
      %p200 = scmp.ne.s32.totalorder %s192, %s194
      %p201 = scmp.eq.s32.totalorder %s37, 1
      %p202 = por %p200, %p201
      %p203 = scmp.ne.s32.totalorder %s194, %s195
      %p204 = scmp.eq.s32.totalorder %s37, 0
      %p205 = por %p203, %p204
      %p206 = scmp.ne.s32.totalorder %s194, %s195
      %p207 = scmp.eq.s32.totalorder %s38, 1
      %p208 = por %p206, %p207
      %p210 = scmp.ne.s32.totalorder %s195, %s209
      %p211 = scmp.eq.s32.totalorder %s38, 0
      %p212 = por %p210, %p211
      %s214 = sadd.s32 %s213, 1
      %p217 = scmp.eq.s32.totalorder %s32, 1
      %p218 = scmp.ne.s32.totalorder %s213, %s215
      %p219 = scmp.eq.s32.totalorder %s32, 0
      %p220 = por %p218, %p219
      %p221 = scmp.ne.s32.totalorder %s213, %s215
      %p222 = scmp.eq.s32.totalorder %s37, 1
      %p223 = por %p221, %p222
      %p224 = scmp.ne.s32.totalorder %s215, %s216
      %p225 = scmp.eq.s32.totalorder %s37, 0
      %p226 = por %p224, %p225
      %p227 = scmp.ne.s32.totalorder %s215, %s216
      %p228 = scmp.eq.s32.totalorder %s38, 1
      %p229 = por %p227, %p228
      %p231 = scmp.ne.s32.totalorder %s216, %s230
      %p232 = scmp.eq.s32.totalorder %s38, 0
      %p233 = por %p231, %p232
      %s235 = sadd.s32 %s234, 1
      %p238 = scmp.eq.s32.totalorder %s32, 1
      %p239 = scmp.ne.s32.totalorder %s234, %s236
      %p240 = scmp.eq.s32.totalorder %s32, 0
      %p241 = por %p239, %p240
      %p242 = scmp.ne.s32.totalorder %s234, %s236
      %p243 = scmp.eq.s32.totalorder %s37, 1
      %p244 = por %p242, %p243
      %p245 = scmp.ne.s32.totalorder %s236, %s237
      %p246 = scmp.eq.s32.totalorder %s37, 0
      %p247 = por %p245, %p246
      %p248 = scmp.ne.s32.totalorder %s236, %s237
      %p249 = scmp.eq.s32.totalorder %s38, 1
      %p250 = por %p248, %p249
      %p252 = scmp.ne.s32.totalorder %s237, %s251
      %p253 = scmp.eq.s32.totalorder %s38, 0
      %p254 = por %p252, %p253
      %s256 = sadd.s32 %s255, 1
      %p259 = scmp.eq.s32.totalorder %s32, 1
      %p260 = scmp.ne.s32.totalorder %s255, %s257
      %p261 = scmp.eq.s32.totalorder %s32, 0
      %p262 = por %p260, %p261
      %p263 = scmp.ne.s32.totalorder %s255, %s257
      %p264 = scmp.eq.s32.totalorder %s37, 1
      %p265 = por %p263, %p264
      %p266 = scmp.ne.s32.totalorder %s257, %s258
      %p267 = scmp.eq.s32.totalorder %s37, 0
      %p268 = por %p266, %p267
      %p269 = scmp.ne.s32.totalorder %s257, %s258
      %p270 = scmp.eq.s32.totalorder %s38, 1
      %p271 = por %p269, %p270
      %p273 = scmp.ne.s32.totalorder %s258, %s272
      %p274 = scmp.eq.s32.totalorder %s38, 0
      %p275 = por %p273, %p274
      %s277 = sadd.s32 %s276, 1
      %p280 = scmp.eq.s32.totalorder %s32, 1
      %p281 = scmp.ne.s32.totalorder %s276, %s278
      %p282 = scmp.eq.s32.totalorder %s32, 0
      %p283 = por %p281, %p282
      %p284 = scmp.ne.s32.totalorder %s276, %s278
      %p285 = scmp.eq.s32.totalorder %s37, 1
      %p286 = por %p284, %p285
      %p287 = scmp.ne.s32.totalorder %s278, %s279
      %p288 = scmp.eq.s32.totalorder %s37, 0
      %p289 = por %p287, %p288
      %p290 = scmp.ne.s32.totalorder %s278, %s279
      %p291 = scmp.eq.s32.totalorder %s38, 1
      %p292 = por %p290, %p291
      %p294 = scmp.ne.s32.totalorder %s279, %s293
      %p295 = scmp.eq.s32.totalorder %s38, 0
      %p296 = por %p294, %p295
      %s298 = sadd.s32 %s297, 1
      %p301 = scmp.eq.s32.totalorder %s32, 1
      %p302 = scmp.ne.s32.totalorder %s297, %s299
      %p303 = scmp.eq.s32.totalorder %s32, 0
      %p304 = por %p302, %p303
      %p305 = scmp.ne.s32.totalorder %s297, %s299
      %p306 = scmp.eq.s32.totalorder %s37, 1
      %p307 = por %p305, %p306
      %p308 = scmp.ne.s32.totalorder %s299, %s300
      %p309 = scmp.eq.s32.totalorder %s37, 0
      %p310 = por %p308, %p309
      %p311 = scmp.ne.s32.totalorder %s299, %s300
      %p312 = scmp.eq.s32.totalorder %s38, 1
      %p313 = por %p311, %p312
      %p315 = scmp.ne.s32.totalorder %s300, %s314
      %p316 = scmp.eq.s32.totalorder %s38, 0
      %p317 = por %p315, %p316
      %s319 = sadd.s32 %s318, 1
      %p322 = scmp.eq.s32.totalorder %s32, 1
      %p323 = scmp.ne.s32.totalorder %s318, %s320
      %p324 = scmp.eq.s32.totalorder %s32, 0
      %p325 = por %p323, %p324
      %p326 = scmp.ne.s32.totalorder %s318, %s320
      %p327 = scmp.eq.s32.totalorder %s37, 1
      %p328 = por %p326, %p327
      %p329 = scmp.ne.s32.totalorder %s320, %s321
      %p330 = scmp.eq.s32.totalorder %s37, 0
      %p331 = por %p329, %p330
      %p332 = scmp.ne.s32.totalorder %s320, %s321
      %p333 = scmp.eq.s32.totalorder %s38, 1
      %p334 = por %p332, %p333
      %p336 = scmp.ne.s32.totalorder %s321, %s335
      %p337 = scmp.eq.s32.totalorder %s38, 0
      %p338 = por %p336, %p337
      %s340 = sadd.s32 %s339, 1
      %p343 = scmp.eq.s32.totalorder %s32, 1
      %p344 = scmp.ne.s32.totalorder %s339, %s341
      %p345 = scmp.eq.s32.totalorder %s32, 0
      %p346 = por %p344, %p345
      %p347 = scmp.ne.s32.totalorder %s339, %s341
      %p348 = scmp.eq.s32.totalorder %s37, 1
      %p349 = por %p347, %p348
      %p350 = scmp.ne.s32.totalorder %s341, %s342
      %p351 = scmp.eq.s32.totalorder %s37, 0
      %p352 = por %p350, %p351
      %p353 = scmp.ne.s32.totalorder %s341, %s342
      %p354 = scmp.eq.s32.totalorder %s38, 1
      %p355 = por %p353, %p354
      %p357 = scmp.ne.s32.totalorder %s342, %s356
      %p358 = scmp.eq.s32.totalorder %s38, 0
      %p359 = por %p357, %p358
      %s361 = sadd.s32 %s360, 1
      %p364 = scmp.eq.s32.totalorder %s32, 1
      %p365 = scmp.ne.s32.totalorder %s360, %s362
      %p366 = scmp.eq.s32.totalorder %s32, 0
      %p367 = por %p365, %p366
      %p368 = scmp.ne.s32.totalorder %s360, %s362
      %p369 = scmp.eq.s32.totalorder %s37, 1
      %p370 = por %p368, %p369
      %p371 = scmp.ne.s32.totalorder %s362, %s363
      %p372 = scmp.eq.s32.totalorder %s37, 0
      %p373 = por %p371, %p372
      %p374 = scmp.ne.s32.totalorder %s362, %s363
      %p375 = scmp.eq.s32.totalorder %s38, 1
      %p376 = por %p374, %p375
      %p378 = scmp.ne.s32.totalorder %s363, %s377
      %p379 = scmp.eq.s32.totalorder %s38, 0
      %p380 = por %p378, %p379
      %s382 = sadd.s32 %s381, 1
      %p385 = scmp.eq.s32.totalorder %s32, 1
      %p386 = scmp.ne.s32.totalorder %s381, %s383
      %p387 = scmp.eq.s32.totalorder %s32, 0
      %p388 = por %p386, %p387
      %p389 = scmp.ne.s32.totalorder %s381, %s383
      %p390 = scmp.eq.s32.totalorder %s37, 1
      %p391 = por %p389, %p390
      %p392 = scmp.ne.s32.totalorder %s383, %s384
      %p393 = scmp.eq.s32.totalorder %s37, 0
      %p394 = por %p392, %p393
      %p395 = scmp.ne.s32.totalorder %s383, %s384
      %p396 = scmp.eq.s32.totalorder %s38, 1
      %p397 = por %p395, %p396
      %p399 = scmp.ne.s32.totalorder %s384, %s398
      %p400 = scmp.eq.s32.totalorder %s38, 0
      %p401 = por %p399, %p400
      %s403 = sadd.s32 %s402, 1
      %p406 = scmp.eq.s32.totalorder %s32, 1
      %p407 = scmp.ne.s32.totalorder %s402, %s404
      %p408 = scmp.eq.s32.totalorder %s32, 0
      %p409 = por %p407, %p408
      %p410 = scmp.ne.s32.totalorder %s402, %s404
      %p411 = scmp.eq.s32.totalorder %s37, 1
      %p412 = por %p410, %p411
      %p413 = scmp.ne.s32.totalorder %s404, %s405
      %p414 = scmp.eq.s32.totalorder %s37, 0
      %p415 = por %p413, %p414
      %p416 = scmp.ne.s32.totalorder %s404, %s405
      %p417 = scmp.eq.s32.totalorder %s38, 1
      %p418 = por %p416, %p417
      %p420 = scmp.ne.s32.totalorder %s405, %s419
      %p421 = scmp.eq.s32.totalorder %s38, 0
      %p422 = por %p420, %p421
      %s423 = ssub.s32 %s32, %s39
      %p424 = scmp.eq.s32.totalorder %s423, 0
      %s426 = sadd.s32 %s425, 1
      %s427 = scalar_select %p424, %s425, %s426
      %p430 = pneg %p424
      %p431 = scmp.eq.s32.totalorder %s32, 1
      %p432 = por %p430, %p431
      %p433 = scmp.ne.s32.totalorder %s425, %s428
      %p434 = scmp.eq.s32.totalorder %s32, 0
      %p435 = por %p433, %p434
      %p436 = scmp.ne.s32.totalorder %s425, %s428
      %p437 = scmp.eq.s32.totalorder %s37, 1
      %p438 = por %p436, %p437
      %p439 = scmp.ne.s32.totalorder %s428, %s429
      %p440 = scmp.eq.s32.totalorder %s37, 0
      %p441 = por %p439, %p440
      %p442 = scmp.ne.s32.totalorder %s428, %s429
      %p443 = scmp.eq.s32.totalorder %s38, 1
      %p444 = por %p442, %p443
      %p446 = scmp.ne.s32.totalorder %s429, %s445
      %p447 = scmp.eq.s32.totalorder %s38, 0
      %p448 = por %p446, %p447
      %p449 = scmp.le.s32.totalorder 1, %s32
      %p450 = scmp.lt.s32.totalorder %s32, 3
      %p451 = pnand %p449, %p450
      %p452 = pneg %p451
      // Predicated region
      $region9: #{tpu_custom_call.1} parent=5 // pred_check
        _
      $region10: #{tpu_custom_call.1} parent=5 // pred_check_branch
        %454 = sbr.rel (%p451) target = $region12
      $region11: #{tpu_custom_call.1} parent=5 // pred_region
        %s455 = ssub.s32 %s32, 1
        // Predicated region
        $region13: #{tpu_custom_call.1} parent=11 // pred_check
          %p456 = pneg %p79
        $region14: #{tpu_custom_call.1} parent=11 // pred_check_branch
          %458 = sbr.rel (%p456) target = $region16
        $region15: #{tpu_custom_call.1} parent=11 // pred_region
          _
        $region16: #{tpu_custom_call.1} parent=11 // pred_fallthru
          _
        // Predicated region
        $region17: #{tpu_custom_call.1} parent=11 // pred_check
          %p459 = pneg %p100
        $region18: #{tpu_custom_call.1} parent=11 // pred_check_branch
          %461 = sbr.rel (%p459) target = $region20
        $region19: #{tpu_custom_call.1} parent=11 // pred_region
          _
        $region20: #{tpu_custom_call.1} parent=11 // pred_fallthru
          _
        // Predicated region
        $region21: #{tpu_custom_call.1} parent=11 // pred_check
          %p462 = pneg %p121
        $region22: #{tpu_custom_call.1} parent=11 // pred_check_branch
          %464 = sbr.rel (%p462) target = $region24
        $region23: #{tpu_custom_call.1} parent=11 // pred_region
          _
        $region24: #{tpu_custom_call.1} parent=11 // pred_fallthru
          _
        // Predicated region
        $region25: #{tpu_custom_call.1} parent=11 // pred_check
          %p465 = pneg %p142
        $region26: #{tpu_custom_call.1} parent=11 // pred_check_branch
          %467 = sbr.rel (%p465) target = $region28
        $region27: #{tpu_custom_call.1} parent=11 // pred_region
          %469 = vsyncadd [#allocation6], 0
          %s470 = sshll.u32 %s4, 4
          %s471 = int_to_ptr.hbm [resolvable:$true] %s470
          %s472 = sshll.u32 [#allocation5], 4
          %s473 = int_to_ptr.vmem [resolvable:$true] %s472
          %478 = dma.hbm_to_vmem [thread:$0]  %s471, 2048, %s473, [#allocation6], 128, 128, 8
        $region28: #{tpu_custom_call.1} parent=11 // pred_fallthru
          _
        // Predicated region
        $region29: #{tpu_custom_call.1} parent=11 // pred_check
          %p479 = pneg %p163
        $region30: #{tpu_custom_call.1} parent=11 // pred_check_branch
          %481 = sbr.rel (%p479) target = $region32
        $region31: #{tpu_custom_call.1} parent=11 // pred_region
          _
        $region32: #{tpu_custom_call.1} parent=11 // pred_fallthru
          _
        // Predicated region
        $region33: #{tpu_custom_call.1} parent=11 // pred_check
          %p482 = pneg %p184
        $region34: #{tpu_custom_call.1} parent=11 // pred_check_branch
          %484 = sbr.rel (%p482) target = $region36
        $region35: #{tpu_custom_call.1} parent=11 // pred_region
          %486 = vsyncadd [#allocation6], 0
          %s487 = sshll.u32 %s6, 4
          %s488 = int_to_ptr.hbm [resolvable:$true] %s487
          %s489 = sshll.u32 [#allocation7], 4
          %s490 = int_to_ptr.vmem [resolvable:$true] %s489
          %495 = dma.hbm_to_vmem [thread:$0]  %s488, 2048, %s490, [#allocation6], 128, 128, 8
        $region36: #{tpu_custom_call.1} parent=11 // pred_fallthru
          _
        // Predicated region
        $region37: #{tpu_custom_call.1} parent=11 // pred_check
          %p496 = pneg %p205
        $region38: #{tpu_custom_call.1} parent=11 // pred_check_branch
          %498 = sbr.rel (%p496) target = $region40
        $region39: #{tpu_custom_call.1} parent=11 // pred_region
          _
        $region40: #{tpu_custom_call.1} parent=11 // pred_fallthru
          _
        // Predicated region
        $region41: #{tpu_custom_call.1} parent=11 // pred_check
          %p499 = pneg %p226
        $region42: #{tpu_custom_call.1} parent=11 // pred_check_branch
          %501 = sbr.rel (%p499) target = $region44
        $region43: #{tpu_custom_call.1} parent=11 // pred_region
          %503 = vsyncadd [#allocation9], 0
          %s504 = sshll.u32 %s8, 4
          %s505 = int_to_ptr.hbm [resolvable:$true] %s504
          %s506 = sshll.u32 [#allocation8], 4
          %s507 = int_to_ptr.vmem [resolvable:$true] %s506
          %512 = dma.hbm_to_vmem [thread:$0]  %s505, 2048, %s507, [#allocation9], 128, 128, 8
        $region44: #{tpu_custom_call.1} parent=11 // pred_fallthru
          _
        // Predicated region
        $region45: #{tpu_custom_call.1} parent=11 // pred_check
          %p513 = pneg %p247
        $region46: #{tpu_custom_call.1} parent=11 // pred_check_branch
          %515 = sbr.rel (%p513) target = $region48
        $region47: #{tpu_custom_call.1} parent=11 // pred_region
          _
        $region48: #{tpu_custom_call.1} parent=11 // pred_fallthru
          _
        // Predicated region
        $region49: #{tpu_custom_call.1} parent=11 // pred_check
          %p516 = pneg %p268
        $region50: #{tpu_custom_call.1} parent=11 // pred_check_branch
          %518 = sbr.rel (%p516) target = $region52
        $region51: #{tpu_custom_call.1} parent=11 // pred_region
          _
        $region52: #{tpu_custom_call.1} parent=11 // pred_fallthru
          _
        // Predicated region
        $region53: #{tpu_custom_call.1} parent=11 // pred_check
          %p519 = pneg %p289
        $region54: #{tpu_custom_call.1} parent=11 // pred_check_branch
          %521 = sbr.rel (%p519) target = $region56
        $region55: #{tpu_custom_call.1} parent=11 // pred_region
          _
        $region56: #{tpu_custom_call.1} parent=11 // pred_fallthru
          _
        // Predicated region
        $region57: #{tpu_custom_call.1} parent=11 // pred_check
          %p522 = pneg %p310
        $region58: #{tpu_custom_call.1} parent=11 // pred_check_branch
          %524 = sbr.rel (%p522) target = $region60
        $region59: #{tpu_custom_call.1} parent=11 // pred_region
          %526 = vsyncadd [#allocation9], 0
          %s527 = sshll.u32 %s12, 4
          %s528 = int_to_ptr.hbm [resolvable:$true] %s527
          %s529 = sshll.u32 [#allocation10], 4
          %s530 = int_to_ptr.vmem [resolvable:$true] %s529
          %535 = dma.hbm_to_vmem [thread:$0]  %s528, 1024, %s530, [#allocation9], 128, 128, 8
        $region60: #{tpu_custom_call.1} parent=11 // pred_fallthru
          _
        // Predicated region
        $region61: #{tpu_custom_call.1} parent=11 // pred_check
          %p536 = pneg %p331
        $region62: #{tpu_custom_call.1} parent=11 // pred_check_branch
          %538 = sbr.rel (%p536) target = $region64
        $region63: #{tpu_custom_call.1} parent=11 // pred_region
          _
        $region64: #{tpu_custom_call.1} parent=11 // pred_fallthru
          _
        // Predicated region
        $region65: #{tpu_custom_call.1} parent=11 // pred_check
          %p539 = pneg %p352
        $region66: #{tpu_custom_call.1} parent=11 // pred_check_branch
          %541 = sbr.rel (%p539) target = $region68
        $region67: #{tpu_custom_call.1} parent=11 // pred_region
          _
        $region68: #{tpu_custom_call.1} parent=11 // pred_fallthru
          _
        // Predicated region
        $region69: #{tpu_custom_call.1} parent=11 // pred_check
          %p542 = pneg %p373
        $region70: #{tpu_custom_call.1} parent=11 // pred_check_branch
          %544 = sbr.rel (%p542) target = $region72
        $region71: #{tpu_custom_call.1} parent=11 // pred_region
          _
        $region72: #{tpu_custom_call.1} parent=11 // pred_fallthru
          _
        // Predicated region
        $region73: #{tpu_custom_call.1} parent=11 // pred_check
          %p545 = pneg %p394
        $region74: #{tpu_custom_call.1} parent=11 // pred_check_branch
          %547 = sbr.rel (%p545) target = $region76
        $region75: #{tpu_custom_call.1} parent=11 // pred_region
          _
        $region76: #{tpu_custom_call.1} parent=11 // pred_fallthru
          _
        // Predicated region
        $region77: #{tpu_custom_call.1} parent=11 // pred_check
          %p548 = pneg %p415
        $region78: #{tpu_custom_call.1} parent=11 // pred_check_branch
          %550 = sbr.rel (%p548) target = $region80
        $region79: #{tpu_custom_call.1} parent=11 // pred_region
          _
        $region80: #{tpu_custom_call.1} parent=11 // pred_fallthru
          _
      $region12: #{tpu_custom_call.1} parent=5 // pred_fallthru
        _
      %p551 = scmp.lt.s32.totalorder %s32, 2
      // Predicated region
      $region81: #{tpu_custom_call.1} parent=5 // pred_check
        %p552 = pneg %p551
      $region82: #{tpu_custom_call.1} parent=5 // pred_check_branch
        %554 = sbr.rel (%p552) target = $region84
      $region83: #{tpu_custom_call.1} parent=5 // pred_region
        // Predicated region
        $region85: #{tpu_custom_call.1} parent=83 // pred_check
          %p555 = pneg %p52
        $region86: #{tpu_custom_call.1} parent=83 // pred_check_branch
          %557 = sbr.rel (%p555) target = $region88
        $region87: #{tpu_custom_call.1} parent=83 // pred_region
          %s558 = sand.u32 %s42, 1
          %s559 = scalar_lea.sflag [#allocation3], %s558
          %s560 = sand.u32 %s42, 1
          %s561 = smul.addr %s560, 8
          %s562 = scalar_lea.vmem [#allocation2], %s561
          %564 = vsyncadd %s559, 0
          %s565 = smul.addr %s32, 8
          %s566 = scalar_lea.hbm %s0, %s565
          %s568 = sshll.u32 %s566, 4
          %s569 = int_to_ptr.hbm [resolvable:$true] %s568
          %s570 = sshll.u32 %s562, 4
          %s571 = int_to_ptr.vmem [resolvable:$true] %s570
          %573 = dma.hbm_to_vmem [thread:$0]  %s569, 128, %s571, %s559
        $region88: #{tpu_custom_call.1} parent=83 // pred_fallthru
          _
      $region84: #{tpu_custom_call.1} parent=5 // pred_fallthru
        _
      %p574 = scmp.le.s32.totalorder 1, %s32
      %p575 = scmp.lt.s32.totalorder %s32, 3
      %p576 = pnand %p574, %p575
      %p577 = pneg %p576
      // Predicated region
      $region89: #{tpu_custom_call.1} parent=5 // pred_check
        _
      $region90: #{tpu_custom_call.1} parent=5 // pred_check_branch
        %579 = sbr.rel (%p576) target = $region92
      $region91: #{tpu_custom_call.1} parent=5 // pred_region
        %s580 = ssub.s32 %s32, 1
        %s581 = sand.u32 %s45, 1
        %s582 = scalar_lea.sflag [#allocation3], %s581
        %s583 = sand.u32 %s45, 1
        %s584 = smul.addr %s583, 8
        %s585 = scalar_lea.vmem [#allocation2], %s584
        // Predicated region
        $region93: #{tpu_custom_call.1} parent=91 // pred_check
          %p586 = pneg %p58
        $region94: #{tpu_custom_call.1} parent=91 // pred_check_branch
          %588 = sbr.rel (%p586) target = $region96
        $region95: #{tpu_custom_call.1} parent=91 // pred_region
          %590 = dma.done %s582, 128
        $region96: #{tpu_custom_call.1} parent=91 // pred_fallthru
          _
        // Predicated region
        $region97: #{tpu_custom_call.1} parent=91 // pred_check
          %p591 = pneg %p142
        $region98: #{tpu_custom_call.1} parent=91 // pred_check_branch
          %593 = sbr.rel (%p591) target = $region100
        $region99: #{tpu_custom_call.1} parent=91 // pred_region
          %595 = dma.done [#allocation6], 2048
        $region100: #{tpu_custom_call.1} parent=91 // pred_fallthru
          _
        // Predicated region
        $region101: #{tpu_custom_call.1} parent=91 // pred_check
          %p596 = pneg %p184
        $region102: #{tpu_custom_call.1} parent=91 // pred_check_branch
          %598 = sbr.rel (%p596) target = $region104
        $region103: #{tpu_custom_call.1} parent=91 // pred_region
          %600 = dma.done [#allocation6], 2048
        $region104: #{tpu_custom_call.1} parent=91 // pred_fallthru
          _
        // Predicated region
        $region105: #{tpu_custom_call.1} parent=91 // pred_check
          %p601 = pneg %p226
        $region106: #{tpu_custom_call.1} parent=91 // pred_check_branch
          %603 = sbr.rel (%p601) target = $region108
        $region107: #{tpu_custom_call.1} parent=91 // pred_region
          %605 = dma.done [#allocation9], 2048
        $region108: #{tpu_custom_call.1} parent=91 // pred_fallthru
          _
        // Predicated region
        $region109: #{tpu_custom_call.1} parent=91 // pred_check
          %p606 = pneg %p310
        $region110: #{tpu_custom_call.1} parent=91 // pred_check_branch
          %608 = sbr.rel (%p606) target = $region112
        $region111: #{tpu_custom_call.1} parent=91 // pred_region
          %610 = dma.done [#allocation9], 1024
        $region112: #{tpu_custom_call.1} parent=91 // pred_fallthru
          _
        %s611 = sand.u32 %s45, 1
        %s612 = scalar_lea.sflag [#allocation3], %s611
        %s613 = sand.u32 %s45, 1
        %s614 = smul.addr %s613, 8
        %s615 = scalar_lea.vmem [#allocation2], %s614
        %p616 = pneg %p58
        %p617 = pneg %p55
        %p618 = pneg %p79
        %p619 = pneg %p76
        %p620 = pneg %p100
        %p621 = pneg %p97
        %p622 = pneg %p121
        %p623 = pneg %p118
        %p624 = pneg %p142
        %p625 = pneg %p139
        %p626 = pneg %p163
        %p627 = pneg %p160
        %p628 = pneg %p184
        %p629 = pneg %p181
        %p630 = pneg %p205
        %p631 = pneg %p202
        %p632 = pneg %p226
        %p633 = pneg %p223
        %p634 = pneg %p247
        %p635 = pneg %p244
        %p636 = pneg %p268
        %p637 = pneg %p265
        %p638 = pneg %p289
        %p639 = pneg %p286
        %p640 = pneg %p310
        %p641 = pneg %p307
        %p642 = pneg %p331
        %p643 = pneg %p328
        %p644 = pneg %p352
        %p645 = pneg %p349
        %p646 = pneg %p373
        %p647 = pneg %p370
        %p648 = pneg %p394
        %p649 = pneg %p391
        %p650 = pneg %p415
        %p651 = pneg %p412
        %p652 = pneg %p441
        %p653 = pneg %p438
        %s654 = sand.u32 %s428, 1
        %s655 = scalar_lea.sflag [#allocation4], %s654
        %s656 = sand.u32 %s428, 1
        %s657 = smul.addr %s656, 8
        %s658 = scalar_lea.vmem [#allocation11], %s657
        %v659 = vld [vmem:[%s585] sm:$0xff]
        %v660 = vld [vmem:[%s14] sm:$0x1]
        %v661 = vld [vmem:[%s15] sm:$0x1]
        %662 = vadd.xlane.f32.xlu0 %v659
        %v663 = vpop.xlane.xlu0 %662
        %v664 = vrcp.pop 128.0
        %v665 = vmul.f32 128.0, %v664
        %v666 = vsub.f32 1.0, %v665
        %v667 = vmul.f32 %v664, %v666
        %v668 = vadd.f32 %v664, %v667
        %vm669 = vweird.f32 %v664
        %v670 = vsel %vm669, %v664, %v668
        %v671 = vmul.f32 %v663, %v670
        %v672 = vmul.f32 %v659, %v659
        %673 = vadd.xlane.f32.xlu0 %v672
        %v674 = vpop.xlane.xlu0 %673
        %v675 = vmul.f32 %v674, %v670
        %v676 = vmul.f32 %v671, %v671
        %v677 = vsub.f32 %v675, %v676
        %v678 = vmul.f32 %v677, 1.007874
        %v679 = vmax.f32 %v678, 0.0
        %v680 = vrsqrt.pop %v679
        %v681 = vmul.f32 %v680, %v679
        %v682 = vmul.f32 %v681, %v680
        %v683 = vmul.f32 0.5, %v682
        %v684 = vsub.f32 1.5, %v683
        %v685 = vmul.f32 %v680, %v684
        %v686 = vmul.f32 %v679, %v685
        %vm687 = vcmp.eq.f32.partialorder %v679, inf
        %v688 = vsel %vm687, %v679, %v686
        %vm689 = vcmp.eq.f32.partialorder %v679, 0.0
        %v690 = vand.u32 %v679, 2147483648
        %v691 = vsel %vm689, %v690, %v688
        %v692 = vsub.f32 %v659, %v671
        %v694 = vperm.slane %v660, 0
        %v696 = vmul.f32 %v694, %v692
        %v697 = vadd.f32 %v691, 1e-06
        %v698 = vrcp.pop %v697
        %v699 = vmul.f32 %v697, %v698
        %v700 = vsub.f32 1.0, %v699
        %v701 = vmul.f32 %v698, %v700
        %v702 = vadd.f32 %v698, %v701
        %vm703 = vweird.f32 %v697
        %vm704 = vweird.f32 %v698
        %vm705 = vmor %vm703, %vm704
        %v706 = vsel %vm705, %v698, %v702
        %v707 = vand.u32 2147483647, %v697
        %vm708 = vcmp.eq.f32.partialorder %v707, 8.507059e+37
        %v709 = vand.u32 %v697, 2147483648
        %v710 = vor.u32 1.1754944e-38, %v709
        %v711 = vsel %vm708, %v710, %v706
        %v712 = vmul.f32 %v696, %v711
        %v714 = vperm.slane %v661, 0
        %v716 = vadd.f32 %v712, %v714
        %v717 = vld [vmem:[%s2] sm:$0xff]
        %v718 = vld [vmem:[%s2 + $0x8] sm:$0xff]
        %v719 = vld [vmem:[%s2 + $0x10] sm:$0xff]
        %v720 = vld [vmem:[%s2 + $0x18] sm:$0xff]
        %v721 = vld [vmem:[%s2 + $0x20] sm:$0xff]
        %v722 = vld [vmem:[%s2 + $0x28] sm:$0xff]
        %v723 = vld [vmem:[%s2 + $0x30] sm:$0xff]
        %v724 = vld [vmem:[%s2 + $0x38] sm:$0xff]
        %v725 = vld [vmem:[%s2 + $0x40] sm:$0xff]
        %v726 = vld [vmem:[%s2 + $0x48] sm:$0xff]
        %v727 = vld [vmem:[%s2 + $0x50] sm:$0xff]
        %v728 = vld [vmem:[%s2 + $0x58] sm:$0xff]
        %v729 = vld [vmem:[%s2 + $0x60] sm:$0xff]
        %v730 = vld [vmem:[%s2 + $0x68] sm:$0xff]
        %v731 = vld [vmem:[%s2 + $0x70] sm:$0xff]
        %v732 = vld [vmem:[%s2 + $0x78] sm:$0xff]
        %v733 = vld [vmem:[%s3] sm:$0x1]
        %v735 = vperm.slane %v733, 0
        %737 = vmatpush.msra.mxu0 %v732
        %738 = vmatpush.msra.mxu0 %v731
        %739 = vmatpush.msra.mxu0 %v730
        %740 = vmatpush.msra.mxu0 %v729
        %741 = vmatpush.msra.mxu0 %v728
        %742 = vmatpush.msra.mxu0 %v727
        %743 = vmatpush.msra.mxu0 %v726
        %744 = vmatpush.msra.mxu0 %v725
        %745 = vmatpush.msra.mxu0 %v724
        %746 = vmatpush.msra.mxu0 %v723
        %747 = vmatpush.msra.mxu0 %v722
        %748 = vmatpush.msra.mxu0 %v721
        %749 = vmatpush.msra.mxu0 %v720
        %750 = vmatpush.msra.mxu0 %v719
        %751 = vmatpush.msra.mxu0 %v718
        %752 = vmatpush.msra.mxu0 %v717
        %753 = vmatmul.f32.gmra.mxu0 %v716
        %v754 = vpop.f32.mrf.mxu0
        %v755 = vadd.f32 %v735, %v754
        %756 = vdwg.mxu0
        %v757 = vmul.f32 %v755, 0.25
        %v758 = vld [vmem:[#allocation5] sm:$0xff]
        %v759 = vld [vmem:[#allocation5 + $0x8] sm:$0xff]
        %v760 = vld [vmem:[#allocation5 + $0x10] sm:$0xff]
        %v761 = vld [vmem:[#allocation5 + $0x18] sm:$0xff]
        %v762 = vld [vmem:[#allocation5 + $0x20] sm:$0xff]
        %v763 = vld [vmem:[#allocation5 + $0x28] sm:$0xff]
        %v764 = vld [vmem:[#allocation5 + $0x30] sm:$0xff]
        %v765 = vld [vmem:[#allocation5 + $0x38] sm:$0xff]
        %v766 = vld [vmem:[#allocation5 + $0x40] sm:$0xff]
        %v767 = vld [vmem:[#allocation5 + $0x48] sm:$0xff]
        %v768 = vld [vmem:[#allocation5 + $0x50] sm:$0xff]
        %v769 = vld [vmem:[#allocation5 + $0x58] sm:$0xff]
        %v770 = vld [vmem:[#allocation5 + $0x60] sm:$0xff]
        %v771 = vld [vmem:[#allocation5 + $0x68] sm:$0xff]
        %v772 = vld [vmem:[#allocation5 + $0x70] sm:$0xff]
        %v773 = vld [vmem:[#allocation5 + $0x78] sm:$0xff]
        %v774 = vld [vmem:[%s5] sm:$0x1]
        %v776 = vperm.slane %v774, 0
        %778 = vmatpush.msra.mxu0 %v773
        %779 = vmatpush.msra.mxu0 %v772
        %780 = vmatpush.msra.mxu0 %v771
        %781 = vmatpush.msra.mxu0 %v770
        %782 = vmatpush.msra.mxu0 %v769
        %783 = vmatpush.msra.mxu0 %v768
        %784 = vmatpush.msra.mxu0 %v767
        %785 = vmatpush.msra.mxu0 %v766
        %786 = vmatpush.msra.mxu0 %v765
        %787 = vmatpush.msra.mxu0 %v764
        %788 = vmatpush.msra.mxu0 %v763
        %789 = vmatpush.msra.mxu0 %v762
        %790 = vmatpush.msra.mxu0 %v761
        %791 = vmatpush.msra.mxu0 %v760
        %792 = vmatpush.msra.mxu0 %v759
        %793 = vmatpush.msra.mxu0 %v758
        %794 = vmatmul.f32.gmra.mxu0 %v716
        %v795 = vpop.f32.mrf.mxu0
        %v796 = vadd.f32 %v776, %v795
        %797 = vdwg.mxu0
        %v798 = vld [vmem:[#allocation7] sm:$0xff]
        %v799 = vld [vmem:[#allocation7 + $0x8] sm:$0xff]
        %v800 = vld [vmem:[#allocation7 + $0x10] sm:$0xff]
        %v801 = vld [vmem:[#allocation7 + $0x18] sm:$0xff]
        %v802 = vld [vmem:[#allocation7 + $0x20] sm:$0xff]
        %v803 = vld [vmem:[#allocation7 + $0x28] sm:$0xff]
        %v804 = vld [vmem:[#allocation7 + $0x30] sm:$0xff]
        %v805 = vld [vmem:[#allocation7 + $0x38] sm:$0xff]
        %v806 = vld [vmem:[#allocation7 + $0x40] sm:$0xff]
        %v807 = vld [vmem:[#allocation7 + $0x48] sm:$0xff]
        %v808 = vld [vmem:[#allocation7 + $0x50] sm:$0xff]
        %v809 = vld [vmem:[#allocation7 + $0x58] sm:$0xff]
        %v810 = vld [vmem:[#allocation7 + $0x60] sm:$0xff]
        %v811 = vld [vmem:[#allocation7 + $0x68] sm:$0xff]
        %v812 = vld [vmem:[#allocation7 + $0x70] sm:$0xff]
        %v813 = vld [vmem:[#allocation7 + $0x78] sm:$0xff]
        %v814 = vld [vmem:[%s7] sm:$0x1]
        %v816 = vperm.slane %v814, 0
        %818 = vmatpush.msra.mxu0 %v813
        %819 = vmatpush.msra.mxu0 %v812
        %820 = vmatpush.msra.mxu0 %v811
        %821 = vmatpush.msra.mxu0 %v810
        %822 = vmatpush.msra.mxu0 %v809
        %823 = vmatpush.msra.mxu0 %v808
        %824 = vmatpush.msra.mxu0 %v807
        %825 = vmatpush.msra.mxu0 %v806
        %826 = vmatpush.msra.mxu0 %v805
        %827 = vmatpush.msra.mxu0 %v804
        %828 = vmatpush.msra.mxu0 %v803
        %829 = vmatpush.msra.mxu0 %v802
        %830 = vmatpush.msra.mxu0 %v801
        %831 = vmatpush.msra.mxu0 %v800
        %832 = vmatpush.msra.mxu0 %v799
        %833 = vmatpush.msra.mxu0 %v798
        %834 = vmatmul.f32.gmra.mxu0 %v716
        %v835 = vpop.f32.mrf.mxu0
        %v836 = vadd.f32 %v816, %v835
        %837 = vdwg.mxu0
        %v838 = vld [vmem:[%s1] sm:$0xff]
        %v839 = vld [vmem:[%s1 + $0x8] sm:$0xff]
        %v840 = vld [vmem:[%s1 + $0x10] sm:$0xff]
        %v841 = vld [vmem:[%s1 + $0x18] sm:$0xff]
        %v842 = vld [vmem:[%s1 + $0x20] sm:$0xff]
        %v843 = vld [vmem:[%s1 + $0x28] sm:$0xff]
        %v844 = vld [vmem:[%s1 + $0x30] sm:$0xff]
        %v845 = vld [vmem:[%s1 + $0x38] sm:$0xff]
        %vm846 = vcmp.eq.f32.partialorder %v838, 0.0
        %vm847 = vcmp.eq.f32.partialorder %v839, 0.0
        %vm848 = vcmp.eq.f32.partialorder %v840, 0.0
        %vm849 = vcmp.eq.f32.partialorder %v841, 0.0
        %vm850 = vcmp.eq.f32.partialorder %v842, 0.0
        %vm851 = vcmp.eq.f32.partialorder %v843, 0.0
        %vm852 = vcmp.eq.f32.partialorder %v844, 0.0
        %vm853 = vcmp.eq.f32.partialorder %v845, 0.0
        %vm854 = vcmask 130048
        %v856 = vsel %vm854, %v757, 0
        %v859 = vsel %vm854, %v796, 0
        %861 = vmatpush.xpose.msra.mxu0 0.0
        %862 = vmatpush.xpose.msra.mxu0 0.0
        %863 = vmatpush.xpose.msra.mxu0 0.0
        %864 = vmatpush.xpose.msra.mxu0 0.0
        %865 = vmatpush.xpose.msra.mxu0 0.0
        %866 = vmatpush.xpose.msra.mxu0 0.0
        %867 = vmatpush.xpose.msra.mxu0 0.0
        %868 = vmatpush.xpose.msra.mxu0 0.0
        %869 = vmatpush.xpose.msra.mxu0 0.0
        %870 = vmatpush.xpose.msra.mxu0 0.0
        %871 = vmatpush.xpose.msra.mxu0 0.0
        %872 = vmatpush.xpose.msra.mxu0 0.0
        %873 = vmatpush.xpose.msra.mxu0 0.0
        %874 = vmatpush.xpose.msra.mxu0 0.0
        %875 = vmatpush.xpose.msra.mxu0 0.0
        %876 = vmatpush.xpose.msra.mxu0 %v859
        %877 = vmatmul.f32.gmra.mxu0 %v856
        %v878 = vpop.f32.mrf.mxu0
        %v879 = vadd.f32 0.0, %v878
        %880 = vdwg.mxu0
        %v881 = vsel %vm846, -1e+09, %v879
        %vm882 = vcmask 64512
        %v883 = vsel %vm882, %v881, -inf
        %884 = vmax.xlane.f32.xlu0 %v883
        %v885 = vpop.xlane.xlu0 %884
        %v886 = vsub.f32 %v881, %v885
        %v887 = vmul.f32 %v886, 1.442695
        %v888 = vpow.pop %v887
        %v889 = vsel %vm882, %v888, 0.0
        %890 = vadd.xlane.f32.xlu0 %v889
        %v891 = vpop.xlane.xlu0 %890
        %v892 = vrcp.pop %v891
        %v893 = vmul.f32 %v891, %v892
        %v894 = vsub.f32 2.0, %v893
        %v895 = vmul.f32 %v892, %v894
        %v896 = vmul.f32 %v888, %v895
        %v898 = vsel %vm882, %v896, 0
        %900 = vmatpush.msra.mxu0 0.0
        %901 = vmatpush.msra.mxu0 0.0
        %902 = vmatpush.msra.mxu0 0.0
        %903 = vmatpush.msra.mxu0 0.0
        %904 = vmatpush.msra.mxu0 0.0
        %905 = vmatpush.msra.mxu0 0.0
        %906 = vmatpush.msra.mxu0 0.0
        %907 = vmatpush.msra.mxu0 0.0
        %908 = vmatpush.msra.mxu0 0.0
        %909 = vmatpush.msra.mxu0 0.0
        %910 = vmatpush.msra.mxu0 0.0
        %911 = vmatpush.msra.mxu0 0.0
        %912 = vmatpush.msra.mxu0 0.0
        %913 = vmatpush.msra.mxu0 0.0
        %914 = vmatpush.msra.mxu0 0.0
        %915 = vmatpush.msra.mxu0 %v836
        %916 = vmatmul.f32.gmra.mxu0 %v898
        %v917 = vpop.f32.mrf.mxu0
        %v918 = vadd.f32 0.0, %v917
        %919 = vdwg.mxu0
        %v920 = vld [vmem:[#allocation8] sm:$0xff]
        %v921 = vld [vmem:[#allocation8 + $0x8] sm:$0xff]
        %922 = vrot.lane.b32.xlu0 %v757, 112
        %v923 = vpop.permute.xlu0 %922
        %924 = vrot.lane.b32.xlu0 %v796, 112
        %v925 = vpop.permute.xlu0 %924
        %v926 = vsel %vm854, %v923, 0
        %v928 = vsel %vm854, %v925, 0
        %930 = vmatpush.xpose.msra.mxu0 0.0
        %931 = vmatpush.xpose.msra.mxu0 0.0
        %932 = vmatpush.xpose.msra.mxu0 0.0
        %933 = vmatpush.xpose.msra.mxu0 0.0
        %934 = vmatpush.xpose.msra.mxu0 0.0
        %935 = vmatpush.xpose.msra.mxu0 0.0
        %936 = vmatpush.xpose.msra.mxu0 0.0
        %937 = vmatpush.xpose.msra.mxu0 0.0
        %938 = vmatpush.xpose.msra.mxu0 0.0
        %939 = vmatpush.xpose.msra.mxu0 0.0
        %940 = vmatpush.xpose.msra.mxu0 0.0
        %941 = vmatpush.xpose.msra.mxu0 0.0
        %942 = vmatpush.xpose.msra.mxu0 0.0
        %943 = vmatpush.xpose.msra.mxu0 0.0
        %944 = vmatpush.xpose.msra.mxu0 0.0
        %945 = vmatpush.xpose.msra.mxu0 %v928
        %946 = vmatmul.f32.gmra.mxu0 %v926
        %v947 = vpop.f32.mrf.mxu0
        %v948 = vadd.f32 0.0, %v947
        %949 = vdwg.mxu0
        %v950 = vsel %vm847, -1e+09, %v948
        %v951 = vsel %vm882, %v950, -inf
        %952 = vmax.xlane.f32.xlu0 %v951
        %v953 = vpop.xlane.xlu0 %952
        %v954 = vsub.f32 %v950, %v953
        %v955 = vmul.f32 %v954, 1.442695
        %v956 = vpow.pop %v955
        %v957 = vsel %vm882, %v956, 0.0
        %958 = vadd.xlane.f32.xlu0 %v957
        %v959 = vpop.xlane.xlu0 %958
        %v960 = vrcp.pop %v959
        %v961 = vmul.f32 %v959, %v960
        %v962 = vsub.f32 2.0, %v961
        %v963 = vmul.f32 %v960, %v962
        %v964 = vmul.f32 %v956, %v963
        %966 = vrot.lane.b32.xlu0 %v836, 112
        %v967 = vpop.permute.xlu0 %966
        %v970 = vsel %vm882, %v964, 0
        %972 = vmatpush.msra.mxu0 0.0
        %973 = vmatpush.msra.mxu0 0.0
        %974 = vmatpush.msra.mxu0 0.0
        %975 = vmatpush.msra.mxu0 0.0
        %976 = vmatpush.msra.mxu0 0.0
        %977 = vmatpush.msra.mxu0 0.0
        %978 = vmatpush.msra.mxu0 0.0
        %979 = vmatpush.msra.mxu0 0.0
        %980 = vmatpush.msra.mxu0 0.0
        %981 = vmatpush.msra.mxu0 0.0
        %982 = vmatpush.msra.mxu0 0.0
        %983 = vmatpush.msra.mxu0 0.0
        %984 = vmatpush.msra.mxu0 0.0
        %985 = vmatpush.msra.mxu0 0.0
        %986 = vmatpush.msra.mxu0 0.0
        %987 = vmatpush.msra.mxu0 %v967
        %988 = vmatmul.f32.gmra.mxu0 %v970
        %v989 = vpop.f32.mrf.mxu0
        %v990 = vadd.f32 0.0, %v989
        %991 = vdwg.mxu0
        %v992 = vld [vmem:[#allocation8 + $0x10] sm:$0xff]
        %v993 = vld [vmem:[#allocation8 + $0x18] sm:$0xff]
        %v995 = vsel %vm854, %v990, 0
        %997 = vmatpush.msra.mxu0 0.0
        %998 = vmatpush.msra.mxu0 0.0
        %999 = vmatpush.msra.mxu0 0.0
        %1000 = vmatpush.msra.mxu0 0.0
        %1001 = vmatpush.msra.mxu0 0.0
        %1002 = vmatpush.msra.mxu0 0.0
        %1003 = vmatpush.msra.mxu0 0.0
        %1004 = vmatpush.msra.mxu0 0.0
        %1005 = vmatpush.msra.mxu0 0.0
        %1006 = vmatpush.msra.mxu0 0.0
        %1007 = vmatpush.msra.mxu0 0.0
        %1008 = vmatpush.msra.mxu0 0.0
        %1009 = vmatpush.msra.mxu0 0.0
        %1010 = vmatpush.msra.mxu0 0.0
        %1011 = vmatpush.msra.mxu0 %v993
        %1012 = vmatpush.msra.mxu0 %v992
        %1013 = vmatmul.f32.gmra.mxu0 %v995
        %v1014 = vpop.f32.mrf.mxu0
        %v1015 = vadd.f32 0.0, %v1014
        %1016 = vdwg.mxu0
        %v1018 = vsel %vm854, %v918, 0
        %1020 = vmatpush.msra.mxu0 0.0
        %1021 = vmatpush.msra.mxu0 0.0
        %1022 = vmatpush.msra.mxu0 0.0
        %1023 = vmatpush.msra.mxu0 0.0
        %1024 = vmatpush.msra.mxu0 0.0
        %1025 = vmatpush.msra.mxu0 0.0
        %1026 = vmatpush.msra.mxu0 0.0
        %1027 = vmatpush.msra.mxu0 0.0
        %1028 = vmatpush.msra.mxu0 0.0
        %1029 = vmatpush.msra.mxu0 0.0
        %1030 = vmatpush.msra.mxu0 0.0
        %1031 = vmatpush.msra.mxu0 0.0
        %1032 = vmatpush.msra.mxu0 0.0
        %1033 = vmatpush.msra.mxu0 0.0
        %1034 = vmatpush.msra.mxu0 %v921
        %1035 = vmatpush.msra.mxu0 %v920
        %1036 = vmatmul.f32.gmra.mxu0 %v1018
        %v1037 = vpop.f32.mrf.mxu0
        %v1038 = vadd.f32 %v1015, %v1037
        %1039 = vdwg.mxu0
        %1040 = vrot.lane.b32.xlu0 %v757, 96
        %v1041 = vpop.permute.xlu0 %1040
        %1042 = vrot.lane.b32.xlu0 %v796, 96
        %v1043 = vpop.permute.xlu0 %1042
        %v1044 = vsel %vm854, %v1041, 0
        %v1046 = vsel %vm854, %v1043, 0
        %1048 = vmatpush.xpose.msra.mxu0 0.0
        %1049 = vmatpush.xpose.msra.mxu0 0.0
        %1050 = vmatpush.xpose.msra.mxu0 0.0
        %1051 = vmatpush.xpose.msra.mxu0 0.0
        %1052 = vmatpush.xpose.msra.mxu0 0.0
        %1053 = vmatpush.xpose.msra.mxu0 0.0
        %1054 = vmatpush.xpose.msra.mxu0 0.0
        %1055 = vmatpush.xpose.msra.mxu0 0.0
        %1056 = vmatpush.xpose.msra.mxu0 0.0
        %1057 = vmatpush.xpose.msra.mxu0 0.0
        %1058 = vmatpush.xpose.msra.mxu0 0.0
        %1059 = vmatpush.xpose.msra.mxu0 0.0
        %1060 = vmatpush.xpose.msra.mxu0 0.0
        %1061 = vmatpush.xpose.msra.mxu0 0.0
        %1062 = vmatpush.xpose.msra.mxu0 0.0
        %1063 = vmatpush.xpose.msra.mxu0 %v1046
        %1064 = vmatmul.f32.gmra.mxu0 %v1044
        %v1065 = vpop.f32.mrf.mxu0
        %v1066 = vadd.f32 0.0, %v1065
        %1067 = vdwg.mxu0
        %v1068 = vsel %vm848, -1e+09, %v1066
        %v1069 = vsel %vm882, %v1068, -inf
        %1070 = vmax.xlane.f32.xlu0 %v1069
        %v1071 = vpop.xlane.xlu0 %1070
        %v1072 = vsub.f32 %v1068, %v1071
        %v1073 = vmul.f32 %v1072, 1.442695
        %v1074 = vpow.pop %v1073
        %v1075 = vsel %vm882, %v1074, 0.0
        %1076 = vadd.xlane.f32.xlu0 %v1075
        %v1077 = vpop.xlane.xlu0 %1076
        %v1078 = vrcp.pop %v1077
        %v1079 = vmul.f32 %v1077, %v1078
        %v1080 = vsub.f32 2.0, %v1079
        %v1081 = vmul.f32 %v1078, %v1080
        %v1082 = vmul.f32 %v1074, %v1081
        %1083 = vrot.lane.b32.xlu0 %v836, 96
        %v1084 = vpop.permute.xlu0 %1083
        %v1087 = vsel %vm882, %v1082, 0
        %1089 = vmatpush.msra.mxu0 0.0
        %1090 = vmatpush.msra.mxu0 0.0
        %1091 = vmatpush.msra.mxu0 0.0
        %1092 = vmatpush.msra.mxu0 0.0
        %1093 = vmatpush.msra.mxu0 0.0
        %1094 = vmatpush.msra.mxu0 0.0
        %1095 = vmatpush.msra.mxu0 0.0
        %1096 = vmatpush.msra.mxu0 0.0
        %1097 = vmatpush.msra.mxu0 0.0
        %1098 = vmatpush.msra.mxu0 0.0
        %1099 = vmatpush.msra.mxu0 0.0
        %1100 = vmatpush.msra.mxu0 0.0
        %1101 = vmatpush.msra.mxu0 0.0
        %1102 = vmatpush.msra.mxu0 0.0
        %1103 = vmatpush.msra.mxu0 0.0
        %1104 = vmatpush.msra.mxu0 %v1084
        %1105 = vmatmul.f32.gmra.mxu0 %v1087
        %v1106 = vpop.f32.mrf.mxu0
        %v1107 = vadd.f32 0.0, %v1106
        %1108 = vdwg.mxu0
        %v1109 = vld [vmem:[#allocation8 + $0x20] sm:$0xff]
        %v1110 = vld [vmem:[#allocation8 + $0x28] sm:$0xff]
        %v1112 = vsel %vm854, %v1107, 0
        %1114 = vmatpush.msra.mxu0 0.0
        %1115 = vmatpush.msra.mxu0 0.0
        %1116 = vmatpush.msra.mxu0 0.0
        %1117 = vmatpush.msra.mxu0 0.0
        %1118 = vmatpush.msra.mxu0 0.0
        %1119 = vmatpush.msra.mxu0 0.0
        %1120 = vmatpush.msra.mxu0 0.0
        %1121 = vmatpush.msra.mxu0 0.0
        %1122 = vmatpush.msra.mxu0 0.0
        %1123 = vmatpush.msra.mxu0 0.0
        %1124 = vmatpush.msra.mxu0 0.0
        %1125 = vmatpush.msra.mxu0 0.0
        %1126 = vmatpush.msra.mxu0 0.0
        %1127 = vmatpush.msra.mxu0 0.0
        %1128 = vmatpush.msra.mxu0 %v1110
        %1129 = vmatpush.msra.mxu0 %v1109
        %1130 = vmatmul.f32.gmra.mxu0 %v1112
        %v1131 = vpop.f32.mrf.mxu0
        %v1132 = vadd.f32 0.0, %v1131
        %1133 = vdwg.mxu0
        %v1134 = vadd.f32 %v1038, %v1132
        %1135 = vrot.lane.b32.xlu0 %v757, 80
        %v1136 = vpop.permute.xlu0 %1135
        %1137 = vrot.lane.b32.xlu0 %v796, 80
        %v1138 = vpop.permute.xlu0 %1137
        %v1139 = vsel %vm854, %v1136, 0
        %v1141 = vsel %vm854, %v1138, 0
        %1143 = vmatpush.xpose.msra.mxu0 0.0
        %1144 = vmatpush.xpose.msra.mxu0 0.0
        %1145 = vmatpush.xpose.msra.mxu0 0.0
        %1146 = vmatpush.xpose.msra.mxu0 0.0
        %1147 = vmatpush.xpose.msra.mxu0 0.0
        %1148 = vmatpush.xpose.msra.mxu0 0.0
        %1149 = vmatpush.xpose.msra.mxu0 0.0
        %1150 = vmatpush.xpose.msra.mxu0 0.0
        %1151 = vmatpush.xpose.msra.mxu0 0.0
        %1152 = vmatpush.xpose.msra.mxu0 0.0
        %1153 = vmatpush.xpose.msra.mxu0 0.0
        %1154 = vmatpush.xpose.msra.mxu0 0.0
        %1155 = vmatpush.xpose.msra.mxu0 0.0
        %1156 = vmatpush.xpose.msra.mxu0 0.0
        %1157 = vmatpush.xpose.msra.mxu0 0.0
        %1158 = vmatpush.xpose.msra.mxu0 %v1141
        %1159 = vmatmul.f32.gmra.mxu0 %v1139
        %v1160 = vpop.f32.mrf.mxu0
        %v1161 = vadd.f32 0.0, %v1160
        %1162 = vdwg.mxu0
        %v1163 = vsel %vm849, -1e+09, %v1161
        %v1164 = vsel %vm882, %v1163, -inf
        %1165 = vmax.xlane.f32.xlu0 %v1164
        %v1166 = vpop.xlane.xlu0 %1165
        %v1167 = vsub.f32 %v1163, %v1166
        %v1168 = vmul.f32 %v1167, 1.442695
        %v1169 = vpow.pop %v1168
        %v1170 = vsel %vm882, %v1169, 0.0
        %1171 = vadd.xlane.f32.xlu0 %v1170
        %v1172 = vpop.xlane.xlu0 %1171
        %v1173 = vrcp.pop %v1172
        %v1174 = vmul.f32 %v1172, %v1173
        %v1175 = vsub.f32 2.0, %v1174
        %v1176 = vmul.f32 %v1173, %v1175
        %v1177 = vmul.f32 %v1169, %v1176
        %1178 = vrot.lane.b32.xlu0 %v836, 80
        %v1179 = vpop.permute.xlu0 %1178
        %v1182 = vsel %vm882, %v1177, 0
        %1184 = vmatpush.msra.mxu0 0.0
        %1185 = vmatpush.msra.mxu0 0.0
        %1186 = vmatpush.msra.mxu0 0.0
        %1187 = vmatpush.msra.mxu0 0.0
        %1188 = vmatpush.msra.mxu0 0.0
        %1189 = vmatpush.msra.mxu0 0.0
        %1190 = vmatpush.msra.mxu0 0.0
        %1191 = vmatpush.msra.mxu0 0.0
        %1192 = vmatpush.msra.mxu0 0.0
        %1193 = vmatpush.msra.mxu0 0.0
        %1194 = vmatpush.msra.mxu0 0.0
        %1195 = vmatpush.msra.mxu0 0.0
        %1196 = vmatpush.msra.mxu0 0.0
        %1197 = vmatpush.msra.mxu0 0.0
        %1198 = vmatpush.msra.mxu0 0.0
        %1199 = vmatpush.msra.mxu0 %v1179
        %1200 = vmatmul.f32.gmra.mxu0 %v1182
        %v1201 = vpop.f32.mrf.mxu0
        %v1202 = vadd.f32 0.0, %v1201
        %1203 = vdwg.mxu0
        %v1204 = vld [vmem:[#allocation8 + $0x30] sm:$0xff]
        %v1205 = vld [vmem:[#allocation8 + $0x38] sm:$0xff]
        %v1207 = vsel %vm854, %v1202, 0
        %1209 = vmatpush.msra.mxu0 0.0
        %1210 = vmatpush.msra.mxu0 0.0
        %1211 = vmatpush.msra.mxu0 0.0
        %1212 = vmatpush.msra.mxu0 0.0
        %1213 = vmatpush.msra.mxu0 0.0
        %1214 = vmatpush.msra.mxu0 0.0
        %1215 = vmatpush.msra.mxu0 0.0
        %1216 = vmatpush.msra.mxu0 0.0
        %1217 = vmatpush.msra.mxu0 0.0
        %1218 = vmatpush.msra.mxu0 0.0
        %1219 = vmatpush.msra.mxu0 0.0
        %1220 = vmatpush.msra.mxu0 0.0
        %1221 = vmatpush.msra.mxu0 0.0
        %1222 = vmatpush.msra.mxu0 0.0
        %1223 = vmatpush.msra.mxu0 %v1205
        %1224 = vmatpush.msra.mxu0 %v1204
        %1225 = vmatmul.f32.gmra.mxu0 %v1207
        %v1226 = vpop.f32.mrf.mxu0
        %v1227 = vadd.f32 0.0, %v1226
        %1228 = vdwg.mxu0
        %v1229 = vadd.f32 %v1134, %v1227
        %1230 = vrot.lane.b32.xlu0 %v757, 64
        %v1231 = vpop.permute.xlu0 %1230
        %1232 = vrot.lane.b32.xlu0 %v796, 64
        %v1233 = vpop.permute.xlu0 %1232
        %v1234 = vsel %vm854, %v1231, 0
        %v1236 = vsel %vm854, %v1233, 0
        %1238 = vmatpush.xpose.msra.mxu0 0.0
        %1239 = vmatpush.xpose.msra.mxu0 0.0
        %1240 = vmatpush.xpose.msra.mxu0 0.0
        %1241 = vmatpush.xpose.msra.mxu0 0.0
        %1242 = vmatpush.xpose.msra.mxu0 0.0
        %1243 = vmatpush.xpose.msra.mxu0 0.0
        %1244 = vmatpush.xpose.msra.mxu0 0.0
        %1245 = vmatpush.xpose.msra.mxu0 0.0
        %1246 = vmatpush.xpose.msra.mxu0 0.0
        %1247 = vmatpush.xpose.msra.mxu0 0.0
        %1248 = vmatpush.xpose.msra.mxu0 0.0
        %1249 = vmatpush.xpose.msra.mxu0 0.0
        %1250 = vmatpush.xpose.msra.mxu0 0.0
        %1251 = vmatpush.xpose.msra.mxu0 0.0
        %1252 = vmatpush.xpose.msra.mxu0 0.0
        %1253 = vmatpush.xpose.msra.mxu0 %v1236
        %1254 = vmatmul.f32.gmra.mxu0 %v1234
        %v1255 = vpop.f32.mrf.mxu0
        %v1256 = vadd.f32 0.0, %v1255
        %1257 = vdwg.mxu0
        %v1258 = vsel %vm850, -1e+09, %v1256
        %v1259 = vsel %vm882, %v1258, -inf
        %1260 = vmax.xlane.f32.xlu0 %v1259
        %v1261 = vpop.xlane.xlu0 %1260
        %v1262 = vsub.f32 %v1258, %v1261
        %v1263 = vmul.f32 %v1262, 1.442695
        %v1264 = vpow.pop %v1263
        %v1265 = vsel %vm882, %v1264, 0.0
        %1266 = vadd.xlane.f32.xlu0 %v1265
        %v1267 = vpop.xlane.xlu0 %1266
        %v1268 = vrcp.pop %v1267
        %v1269 = vmul.f32 %v1267, %v1268
        %v1270 = vsub.f32 2.0, %v1269
        %v1271 = vmul.f32 %v1268, %v1270
        %v1272 = vmul.f32 %v1264, %v1271
        %1273 = vrot.lane.b32.xlu0 %v836, 64
        %v1274 = vpop.permute.xlu0 %1273
        %v1277 = vsel %vm882, %v1272, 0
        %1279 = vmatpush.msra.mxu0 0.0
        %1280 = vmatpush.msra.mxu0 0.0
        %1281 = vmatpush.msra.mxu0 0.0
        %1282 = vmatpush.msra.mxu0 0.0
        %1283 = vmatpush.msra.mxu0 0.0
        %1284 = vmatpush.msra.mxu0 0.0
        %1285 = vmatpush.msra.mxu0 0.0
        %1286 = vmatpush.msra.mxu0 0.0
        %1287 = vmatpush.msra.mxu0 0.0
        %1288 = vmatpush.msra.mxu0 0.0
        %1289 = vmatpush.msra.mxu0 0.0
        %1290 = vmatpush.msra.mxu0 0.0
        %1291 = vmatpush.msra.mxu0 0.0
        %1292 = vmatpush.msra.mxu0 0.0
        %1293 = vmatpush.msra.mxu0 0.0
        %1294 = vmatpush.msra.mxu0 %v1274
        %1295 = vmatmul.f32.gmra.mxu0 %v1277
        %v1296 = vpop.f32.mrf.mxu0
        %v1297 = vadd.f32 0.0, %v1296
        %1298 = vdwg.mxu0
        %v1299 = vld [vmem:[#allocation8 + $0x40] sm:$0xff]
        %v1300 = vld [vmem:[#allocation8 + $0x48] sm:$0xff]
        %v1302 = vsel %vm854, %v1297, 0
        %1304 = vmatpush.msra.mxu0 0.0
        %1305 = vmatpush.msra.mxu0 0.0
        %1306 = vmatpush.msra.mxu0 0.0
        %1307 = vmatpush.msra.mxu0 0.0
        %1308 = vmatpush.msra.mxu0 0.0
        %1309 = vmatpush.msra.mxu0 0.0
        %1310 = vmatpush.msra.mxu0 0.0
        %1311 = vmatpush.msra.mxu0 0.0
        %1312 = vmatpush.msra.mxu0 0.0
        %1313 = vmatpush.msra.mxu0 0.0
        %1314 = vmatpush.msra.mxu0 0.0
        %1315 = vmatpush.msra.mxu0 0.0
        %1316 = vmatpush.msra.mxu0 0.0
        %1317 = vmatpush.msra.mxu0 0.0
        %1318 = vmatpush.msra.mxu0 %v1300
        %1319 = vmatpush.msra.mxu0 %v1299
        %1320 = vmatmul.f32.gmra.mxu0 %v1302
        %v1321 = vpop.f32.mrf.mxu0
        %v1322 = vadd.f32 0.0, %v1321
        %1323 = vdwg.mxu0
        %v1324 = vadd.f32 %v1229, %v1322
        %1325 = vrot.lane.b32.xlu0 %v757, 48
        %v1326 = vpop.permute.xlu0 %1325
        %1327 = vrot.lane.b32.xlu0 %v796, 48
        %v1328 = vpop.permute.xlu0 %1327
        %v1329 = vsel %vm854, %v1326, 0
        %v1331 = vsel %vm854, %v1328, 0
        %1333 = vmatpush.xpose.msra.mxu0 0.0
        %1334 = vmatpush.xpose.msra.mxu0 0.0
        %1335 = vmatpush.xpose.msra.mxu0 0.0
        %1336 = vmatpush.xpose.msra.mxu0 0.0
        %1337 = vmatpush.xpose.msra.mxu0 0.0
        %1338 = vmatpush.xpose.msra.mxu0 0.0
        %1339 = vmatpush.xpose.msra.mxu0 0.0
        %1340 = vmatpush.xpose.msra.mxu0 0.0
        %1341 = vmatpush.xpose.msra.mxu0 0.0
        %1342 = vmatpush.xpose.msra.mxu0 0.0
        %1343 = vmatpush.xpose.msra.mxu0 0.0
        %1344 = vmatpush.xpose.msra.mxu0 0.0
        %1345 = vmatpush.xpose.msra.mxu0 0.0
        %1346 = vmatpush.xpose.msra.mxu0 0.0
        %1347 = vmatpush.xpose.msra.mxu0 0.0
        %1348 = vmatpush.xpose.msra.mxu0 %v1331
        %1349 = vmatmul.f32.gmra.mxu0 %v1329
        %v1350 = vpop.f32.mrf.mxu0
        %v1351 = vadd.f32 0.0, %v1350
        %1352 = vdwg.mxu0
        %v1353 = vsel %vm851, -1e+09, %v1351
        %v1354 = vsel %vm882, %v1353, -inf
        %1355 = vmax.xlane.f32.xlu0 %v1354
        %v1356 = vpop.xlane.xlu0 %1355
        %v1357 = vsub.f32 %v1353, %v1356
        %v1358 = vmul.f32 %v1357, 1.442695
        %v1359 = vpow.pop %v1358
        %v1360 = vsel %vm882, %v1359, 0.0
        %1361 = vadd.xlane.f32.xlu0 %v1360
        %v1362 = vpop.xlane.xlu0 %1361
        %v1363 = vrcp.pop %v1362
        %v1364 = vmul.f32 %v1362, %v1363
        %v1365 = vsub.f32 2.0, %v1364
        %v1366 = vmul.f32 %v1363, %v1365
        %v1367 = vmul.f32 %v1359, %v1366
        %1368 = vrot.lane.b32.xlu0 %v836, 48
        %v1369 = vpop.permute.xlu0 %1368
        %v1372 = vsel %vm882, %v1367, 0
        %1374 = vmatpush.msra.mxu0 0.0
        %1375 = vmatpush.msra.mxu0 0.0
        %1376 = vmatpush.msra.mxu0 0.0
        %1377 = vmatpush.msra.mxu0 0.0
        %1378 = vmatpush.msra.mxu0 0.0
        %1379 = vmatpush.msra.mxu0 0.0
        %1380 = vmatpush.msra.mxu0 0.0
        %1381 = vmatpush.msra.mxu0 0.0
        %1382 = vmatpush.msra.mxu0 0.0
        %1383 = vmatpush.msra.mxu0 0.0
        %1384 = vmatpush.msra.mxu0 0.0
        %1385 = vmatpush.msra.mxu0 0.0
        %1386 = vmatpush.msra.mxu0 0.0
        %1387 = vmatpush.msra.mxu0 0.0
        %1388 = vmatpush.msra.mxu0 0.0
        %1389 = vmatpush.msra.mxu0 %v1369
        %1390 = vmatmul.f32.gmra.mxu0 %v1372
        %v1391 = vpop.f32.mrf.mxu0
        %v1392 = vadd.f32 0.0, %v1391
        %1393 = vdwg.mxu0
        %v1394 = vld [vmem:[#allocation8 + $0x50] sm:$0xff]
        %v1395 = vld [vmem:[#allocation8 + $0x58] sm:$0xff]
        %v1397 = vsel %vm854, %v1392, 0
        %1399 = vmatpush.msra.mxu0 0.0
        %1400 = vmatpush.msra.mxu0 0.0
        %1401 = vmatpush.msra.mxu0 0.0
        %1402 = vmatpush.msra.mxu0 0.0
        %1403 = vmatpush.msra.mxu0 0.0
        %1404 = vmatpush.msra.mxu0 0.0
        %1405 = vmatpush.msra.mxu0 0.0
        %1406 = vmatpush.msra.mxu0 0.0
        %1407 = vmatpush.msra.mxu0 0.0
        %1408 = vmatpush.msra.mxu0 0.0
        %1409 = vmatpush.msra.mxu0 0.0
        %1410 = vmatpush.msra.mxu0 0.0
        %1411 = vmatpush.msra.mxu0 0.0
        %1412 = vmatpush.msra.mxu0 0.0
        %1413 = vmatpush.msra.mxu0 %v1395
        %1414 = vmatpush.msra.mxu0 %v1394
        %1415 = vmatmul.f32.gmra.mxu0 %v1397
        %v1416 = vpop.f32.mrf.mxu0
        %v1417 = vadd.f32 0.0, %v1416
        %1418 = vdwg.mxu0
        %v1419 = vadd.f32 %v1324, %v1417
        %1420 = vrot.lane.b32.xlu0 %v757, 32
        %v1421 = vpop.permute.xlu0 %1420
        %1422 = vrot.lane.b32.xlu0 %v796, 32
        %v1423 = vpop.permute.xlu0 %1422
        %v1424 = vsel %vm854, %v1421, 0
        %v1426 = vsel %vm854, %v1423, 0
        %1428 = vmatpush.xpose.msra.mxu0 0.0
        %1429 = vmatpush.xpose.msra.mxu0 0.0
        %1430 = vmatpush.xpose.msra.mxu0 0.0
        %1431 = vmatpush.xpose.msra.mxu0 0.0
        %1432 = vmatpush.xpose.msra.mxu0 0.0
        %1433 = vmatpush.xpose.msra.mxu0 0.0
        %1434 = vmatpush.xpose.msra.mxu0 0.0
        %1435 = vmatpush.xpose.msra.mxu0 0.0
        %1436 = vmatpush.xpose.msra.mxu0 0.0
        %1437 = vmatpush.xpose.msra.mxu0 0.0
        %1438 = vmatpush.xpose.msra.mxu0 0.0
        %1439 = vmatpush.xpose.msra.mxu0 0.0
        %1440 = vmatpush.xpose.msra.mxu0 0.0
        %1441 = vmatpush.xpose.msra.mxu0 0.0
        %1442 = vmatpush.xpose.msra.mxu0 0.0
        %1443 = vmatpush.xpose.msra.mxu0 %v1426
        %1444 = vmatmul.f32.gmra.mxu0 %v1424
        %v1445 = vpop.f32.mrf.mxu0
        %v1446 = vadd.f32 0.0, %v1445
        %1447 = vdwg.mxu0
        %v1448 = vsel %vm852, -1e+09, %v1446
        %v1449 = vsel %vm882, %v1448, -inf
        %1450 = vmax.xlane.f32.xlu0 %v1449
        %v1451 = vpop.xlane.xlu0 %1450
        %v1452 = vsub.f32 %v1448, %v1451
        %v1453 = vmul.f32 %v1452, 1.442695
        %v1454 = vpow.pop %v1453
        %v1455 = vsel %vm882, %v1454, 0.0
        %1456 = vadd.xlane.f32.xlu0 %v1455
        %v1457 = vpop.xlane.xlu0 %1456
        %v1458 = vrcp.pop %v1457
        %v1459 = vmul.f32 %v1457, %v1458
        %v1460 = vsub.f32 2.0, %v1459
        %v1461 = vmul.f32 %v1458, %v1460
        %v1462 = vmul.f32 %v1454, %v1461
        %1463 = vrot.lane.b32.xlu0 %v836, 32
        %v1464 = vpop.permute.xlu0 %1463
        %v1467 = vsel %vm882, %v1462, 0
        %1469 = vmatpush.msra.mxu0 0.0
        %1470 = vmatpush.msra.mxu0 0.0
        %1471 = vmatpush.msra.mxu0 0.0
        %1472 = vmatpush.msra.mxu0 0.0
        %1473 = vmatpush.msra.mxu0 0.0
        %1474 = vmatpush.msra.mxu0 0.0
        %1475 = vmatpush.msra.mxu0 0.0
        %1476 = vmatpush.msra.mxu0 0.0
        %1477 = vmatpush.msra.mxu0 0.0
        %1478 = vmatpush.msra.mxu0 0.0
        %1479 = vmatpush.msra.mxu0 0.0
        %1480 = vmatpush.msra.mxu0 0.0
        %1481 = vmatpush.msra.mxu0 0.0
        %1482 = vmatpush.msra.mxu0 0.0
        %1483 = vmatpush.msra.mxu0 0.0
        %1484 = vmatpush.msra.mxu0 %v1464
        %1485 = vmatmul.f32.gmra.mxu0 %v1467
        %v1486 = vpop.f32.mrf.mxu0
        %v1487 = vadd.f32 0.0, %v1486
        %1488 = vdwg.mxu0
        %v1489 = vld [vmem:[#allocation8 + $0x60] sm:$0xff]
        %v1490 = vld [vmem:[#allocation8 + $0x68] sm:$0xff]
        %v1492 = vsel %vm854, %v1487, 0
        %1494 = vmatpush.msra.mxu0 0.0
        %1495 = vmatpush.msra.mxu0 0.0
        %1496 = vmatpush.msra.mxu0 0.0
        %1497 = vmatpush.msra.mxu0 0.0
        %1498 = vmatpush.msra.mxu0 0.0
        %1499 = vmatpush.msra.mxu0 0.0
        %1500 = vmatpush.msra.mxu0 0.0
        %1501 = vmatpush.msra.mxu0 0.0
        %1502 = vmatpush.msra.mxu0 0.0
        %1503 = vmatpush.msra.mxu0 0.0
        %1504 = vmatpush.msra.mxu0 0.0
        %1505 = vmatpush.msra.mxu0 0.0
        %1506 = vmatpush.msra.mxu0 0.0
        %1507 = vmatpush.msra.mxu0 0.0
        %1508 = vmatpush.msra.mxu0 %v1490
        %1509 = vmatpush.msra.mxu0 %v1489
        %1510 = vmatmul.f32.gmra.mxu0 %v1492
        %v1511 = vpop.f32.mrf.mxu0
        %v1512 = vadd.f32 0.0, %v1511
        %1513 = vdwg.mxu0
        %v1514 = vadd.f32 %v1419, %v1512
        %1515 = vrot.lane.b32.xlu0 %v757, 16
        %v1516 = vpop.permute.xlu0 %1515
        %1517 = vrot.lane.b32.xlu0 %v796, 16
        %v1518 = vpop.permute.xlu0 %1517
        %v1519 = vsel %vm854, %v1516, 0
        %v1521 = vsel %vm854, %v1518, 0
        %1523 = vmatpush.xpose.msra.mxu0 0.0
        %1524 = vmatpush.xpose.msra.mxu0 0.0
        %1525 = vmatpush.xpose.msra.mxu0 0.0
        %1526 = vmatpush.xpose.msra.mxu0 0.0
        %1527 = vmatpush.xpose.msra.mxu0 0.0
        %1528 = vmatpush.xpose.msra.mxu0 0.0
        %1529 = vmatpush.xpose.msra.mxu0 0.0
        %1530 = vmatpush.xpose.msra.mxu0 0.0
        %1531 = vmatpush.xpose.msra.mxu0 0.0
        %1532 = vmatpush.xpose.msra.mxu0 0.0
        %1533 = vmatpush.xpose.msra.mxu0 0.0
        %1534 = vmatpush.xpose.msra.mxu0 0.0
        %1535 = vmatpush.xpose.msra.mxu0 0.0
        %1536 = vmatpush.xpose.msra.mxu0 0.0
        %1537 = vmatpush.xpose.msra.mxu0 0.0
        %1538 = vmatpush.xpose.msra.mxu0 %v1521
        %1539 = vmatmul.f32.gmra.mxu0 %v1519
        %v1540 = vpop.f32.mrf.mxu0
        %v1541 = vadd.f32 0.0, %v1540
        %1542 = vdwg.mxu0
        %v1543 = vsel %vm853, -1e+09, %v1541
        %v1544 = vsel %vm882, %v1543, -inf
        %1545 = vmax.xlane.f32.xlu0 %v1544
        %v1546 = vpop.xlane.xlu0 %1545
        %v1547 = vsub.f32 %v1543, %v1546
        %v1548 = vmul.f32 %v1547, 1.442695
        %v1549 = vpow.pop %v1548
        %v1550 = vsel %vm882, %v1549, 0.0
        %1551 = vadd.xlane.f32.xlu0 %v1550
        %v1552 = vpop.xlane.xlu0 %1551
        %v1553 = vrcp.pop %v1552
        %v1554 = vmul.f32 %v1552, %v1553
        %v1555 = vsub.f32 2.0, %v1554
        %v1556 = vmul.f32 %v1553, %v1555
        %v1557 = vmul.f32 %v1549, %v1556
        %1558 = vrot.lane.b32.xlu0 %v836, 16
        %v1559 = vpop.permute.xlu0 %1558
        %v1562 = vsel %vm882, %v1557, 0
        %1564 = vmatpush.msra.mxu0 0.0
        %1565 = vmatpush.msra.mxu0 0.0
        %1566 = vmatpush.msra.mxu0 0.0
        %1567 = vmatpush.msra.mxu0 0.0
        %1568 = vmatpush.msra.mxu0 0.0
        %1569 = vmatpush.msra.mxu0 0.0
        %1570 = vmatpush.msra.mxu0 0.0
        %1571 = vmatpush.msra.mxu0 0.0
        %1572 = vmatpush.msra.mxu0 0.0
        %1573 = vmatpush.msra.mxu0 0.0
        %1574 = vmatpush.msra.mxu0 0.0
        %1575 = vmatpush.msra.mxu0 0.0
        %1576 = vmatpush.msra.mxu0 0.0
        %1577 = vmatpush.msra.mxu0 0.0
        %1578 = vmatpush.msra.mxu0 0.0
        %1579 = vmatpush.msra.mxu0 %v1559
        %1580 = vmatmul.f32.gmra.mxu0 %v1562
        %v1581 = vpop.f32.mrf.mxu0
        %v1582 = vadd.f32 0.0, %v1581
        %1583 = vdwg.mxu0
        %v1584 = vld [vmem:[#allocation8 + $0x70] sm:$0xff]
        %v1585 = vld [vmem:[#allocation8 + $0x78] sm:$0xff]
        %v1587 = vsel %vm854, %v1582, 0
        %1589 = vmatpush.msra.mxu0 0.0
        %1590 = vmatpush.msra.mxu0 0.0
        %1591 = vmatpush.msra.mxu0 0.0
        %1592 = vmatpush.msra.mxu0 0.0
        %1593 = vmatpush.msra.mxu0 0.0
        %1594 = vmatpush.msra.mxu0 0.0
        %1595 = vmatpush.msra.mxu0 0.0
        %1596 = vmatpush.msra.mxu0 0.0
        %1597 = vmatpush.msra.mxu0 0.0
        %1598 = vmatpush.msra.mxu0 0.0
        %1599 = vmatpush.msra.mxu0 0.0
        %1600 = vmatpush.msra.mxu0 0.0
        %1601 = vmatpush.msra.mxu0 0.0
        %1602 = vmatpush.msra.mxu0 0.0
        %1603 = vmatpush.msra.mxu0 %v1585
        %1604 = vmatpush.msra.mxu0 %v1584
        %1605 = vmatmul.f32.gmra.mxu0 %v1587
        %v1606 = vpop.f32.mrf.mxu0
        %v1607 = vadd.f32 0.0, %v1606
        %1608 = vdwg.mxu0
        %v1609 = vadd.f32 %v1514, %v1607
        %v1610 = vadd.f32 %v659, %v1609
        %v1611 = vld [vmem:[%s9] sm:$0x1]
        %v1613 = vperm.slane %v1611, 0
        %v1615 = vadd.f32 %v1610, %v1613
        %v1616 = vld [vmem:[%s16] sm:$0x1]
        %v1617 = vld [vmem:[%s17] sm:$0x1]
        %1618 = vadd.xlane.f32.xlu0 %v1615
        %v1619 = vpop.xlane.xlu0 %1618
        %v1620 = vmul.f32 %v1619, %v670
        %v1621 = vmul.f32 %v1615, %v1615
        %1622 = vadd.xlane.f32.xlu0 %v1621
        %v1623 = vpop.xlane.xlu0 %1622
        %v1624 = vmul.f32 %v1623, %v670
        %v1625 = vmul.f32 %v1620, %v1620
        %v1626 = vsub.f32 %v1624, %v1625
        %v1627 = vmul.f32 %v1626, 1.007874
        %v1628 = vmax.f32 %v1627, 0.0
        %v1629 = vrsqrt.pop %v1628
        %v1630 = vmul.f32 %v1629, %v1628
        %v1631 = vmul.f32 %v1630, %v1629
        %v1632 = vmul.f32 0.5, %v1631
        %v1633 = vsub.f32 1.5, %v1632
        %v1634 = vmul.f32 %v1629, %v1633
        %v1635 = vmul.f32 %v1628, %v1634
        %vm1636 = vcmp.eq.f32.partialorder %v1628, inf
        %v1637 = vsel %vm1636, %v1628, %v1635
        %vm1638 = vcmp.eq.f32.partialorder %v1628, 0.0
        %v1639 = vand.u32 %v1628, 2147483648
        %v1640 = vsel %vm1638, %v1639, %v1637
        %v1641 = vsub.f32 %v1615, %v1620
        %v1643 = vperm.slane %v1616, 0
        %v1645 = vmul.f32 %v1643, %v1641
        %v1646 = vadd.f32 %v1640, 1e-06
        %v1647 = vrcp.pop %v1646
        %v1648 = vmul.f32 %v1646, %v1647
        %v1649 = vsub.f32 1.0, %v1648
        %v1650 = vmul.f32 %v1647, %v1649
        %v1651 = vadd.f32 %v1647, %v1650
        %vm1652 = vweird.f32 %v1646
        %vm1653 = vweird.f32 %v1647
        %vm1654 = vmor %vm1652, %vm1653
        %v1655 = vsel %vm1654, %v1647, %v1651
        %v1656 = vand.u32 2147483647, %v1646
        %vm1657 = vcmp.eq.f32.partialorder %v1656, 8.507059e+37
        %v1658 = vand.u32 %v1646, 2147483648
        %v1659 = vor.u32 1.1754944e-38, %v1658
        %v1660 = vsel %vm1657, %v1659, %v1655
        %v1661 = vmul.f32 %v1645, %v1660
        %v1663 = vperm.slane %v1617, 0
        %v1665 = vadd.f32 %v1661, %v1663
        %v1666 = vld [vmem:[%s10] sm:$0xff]
        %v1667 = vld [vmem:[%s10 + $0x8] sm:$0xff]
        %v1668 = vld [vmem:[%s10 + $0x10] sm:$0xff]
        %v1669 = vld [vmem:[%s10 + $0x18] sm:$0xff]
        %v1670 = vld [vmem:[%s10 + $0x20] sm:$0xff]
        %v1671 = vld [vmem:[%s10 + $0x28] sm:$0xff]
        %v1672 = vld [vmem:[%s10 + $0x30] sm:$0xff]
        %v1673 = vld [vmem:[%s10 + $0x38] sm:$0xff]
        %v1674 = vld [vmem:[%s10 + $0x40] sm:$0xff]
        %v1675 = vld [vmem:[%s10 + $0x48] sm:$0xff]
        %v1676 = vld [vmem:[%s10 + $0x50] sm:$0xff]
        %v1677 = vld [vmem:[%s10 + $0x58] sm:$0xff]
        %v1678 = vld [vmem:[%s10 + $0x60] sm:$0xff]
        %v1679 = vld [vmem:[%s10 + $0x68] sm:$0xff]
        %v1680 = vld [vmem:[%s10 + $0x70] sm:$0xff]
        %v1681 = vld [vmem:[%s10 + $0x78] sm:$0xff]
        %v1682 = vld [vmem:[%s11] sm:$0x1]
        %v1684 = vperm.slane %v1682, 0
        %1686 = vmatpush.msra.mxu0 %v1681
        %1687 = vmatpush.msra.mxu0 %v1680
        %1688 = vmatpush.msra.mxu0 %v1679
        %1689 = vmatpush.msra.mxu0 %v1678
        %1690 = vmatpush.msra.mxu0 %v1677
        %1691 = vmatpush.msra.mxu0 %v1676
        %1692 = vmatpush.msra.mxu0 %v1675
        %1693 = vmatpush.msra.mxu0 %v1674
        %1694 = vmatpush.msra.mxu0 %v1673
        %1695 = vmatpush.msra.mxu0 %v1672
        %1696 = vmatpush.msra.mxu0 %v1671
        %1697 = vmatpush.msra.mxu0 %v1670
        %1698 = vmatpush.msra.mxu0 %v1669
        %1699 = vmatpush.msra.mxu0 %v1668
        %1700 = vmatpush.msra.mxu0 %v1667
        %1701 = vmatpush.msra.mxu0 %v1666
        %1702 = vmatmul.f32.gmra.mxu0 %v1665
        %v1703 = vpop.f32.mrf.mxu0
        %v1704 = vadd.f32 %v1684, %v1703
        %1705 = vdwg.mxu0
        %v1706 = vmax.f32 %v1704, 0.0
        %v1707 = vld [vmem:[#allocation10] sm:$0xff]
        %v1708 = vld [vmem:[#allocation10 + $0x8] sm:$0xff]
        %v1709 = vld [vmem:[#allocation10 + $0x10] sm:$0xff]
        %v1710 = vld [vmem:[#allocation10 + $0x18] sm:$0xff]
        %v1711 = vld [vmem:[#allocation10 + $0x20] sm:$0xff]
        %v1712 = vld [vmem:[#allocation10 + $0x28] sm:$0xff]
        %v1713 = vld [vmem:[#allocation10 + $0x30] sm:$0xff]
        %v1714 = vld [vmem:[#allocation10 + $0x38] sm:$0xff]
        %v1715 = vld [vmem:[%s13] sm:$0x1]
        %v1717 = vperm.slane %v1715, 0
        %vm1719 = vcmask 523264
        %v1721 = vsel %vm1719, %v1706, 0
        %1723 = vmatpush.msra.mxu0 0.0
        %1724 = vmatpush.msra.mxu0 0.0
        %1725 = vmatpush.msra.mxu0 0.0
        %1726 = vmatpush.msra.mxu0 0.0
        %1727 = vmatpush.msra.mxu0 0.0
        %1728 = vmatpush.msra.mxu0 0.0
        %1729 = vmatpush.msra.mxu0 0.0
        %1730 = vmatpush.msra.mxu0 0.0
        %1731 = vmatpush.msra.mxu0 %v1714
        %1732 = vmatpush.msra.mxu0 %v1713
        %1733 = vmatpush.msra.mxu0 %v1712
        %1734 = vmatpush.msra.mxu0 %v1711
        %1735 = vmatpush.msra.mxu0 %v1710
        %1736 = vmatpush.msra.mxu0 %v1709
        %1737 = vmatpush.msra.mxu0 %v1708
        %1738 = vmatpush.msra.mxu0 %v1707
        %1739 = vmatmul.f32.gmra.mxu0 %v1721
        %v1740 = vpop.f32.mrf.mxu0
        %v1741 = vadd.f32 %v1717, %v1740
        %1742 = vdwg.mxu0
        %v1743 = vadd.f32 %v1615, %v1741
        %1744 = vst [vmem:[%s658] sm:$0xff] %v1743
        %s1745 = sand.u32 %s428, 1
        %s1746 = scalar_lea.sflag [#allocation4], %s1745
        %s1747 = sand.u32 %s428, 1
        %s1748 = smul.addr %s1747, 8
        %s1749 = scalar_lea.vmem [#allocation11], %s1748
        // Predicated region
        $region113: #{tpu_custom_call.1} parent=91 // pred_check
          %p1750 = pneg %p438
        $region114: #{tpu_custom_call.1} parent=91 // pred_check_branch
          %1752 = sbr.rel (%p1750) target = $region116
        $region115: #{tpu_custom_call.1} parent=91 // pred_region
          %1754 = vsyncadd %s1746, 0
          %s1755 = smul.addr %s37, 8
          %s1756 = scalar_lea.hbm %s18, %s1755
          %s1758 = sshll.u32 %s1749, 4
          %s1759 = int_to_ptr.vmem [resolvable:$true] %s1758
          %s1760 = sshll.u32 %s1756, 4
          %s1761 = int_to_ptr.hbm [resolvable:$true] %s1760
          %1763 = dma.vmem_to_hbm [thread:$0]  %s1759, 128, %s1761, %s1746
        $region116: #{tpu_custom_call.1} parent=91 // pred_fallthru
          _
      $region92: #{tpu_custom_call.1} parent=5 // pred_fallthru
        _
      %p1764 = scmp.le.s32.totalorder 2, %s32
      // Predicated region
      $region117: #{tpu_custom_call.1} parent=5 // pred_check
        %p1765 = pneg %p1764
      $region118: #{tpu_custom_call.1} parent=5 // pred_check_branch
        %1767 = sbr.rel (%p1765) target = $region120
      $region119: #{tpu_custom_call.1} parent=5 // pred_region
        %s1768 = ssub.s32 %s32, 2
        // Predicated region
        $region121: #{tpu_custom_call.1} parent=119 // pred_check
          %p1769 = pneg %p444
        $region122: #{tpu_custom_call.1} parent=119 // pred_check_branch
          %1771 = sbr.rel (%p1769) target = $region124
        $region123: #{tpu_custom_call.1} parent=119 // pred_region
          %s1772 = sand.u32 %s429, 1
          %s1773 = scalar_lea.sflag [#allocation4], %s1772
          %s1774 = sand.u32 %s429, 1
          %s1775 = smul.addr %s1774, 8
          %s1776 = scalar_lea.vmem [#allocation11], %s1775
          %1778 = dma.done %s1773, 128
        $region124: #{tpu_custom_call.1} parent=119 // pred_fallthru
          _
      $region120: #{tpu_custom_call.1} parent=5 // pred_fallthru
        _
    $region6: #{tpu_custom_call.1} parent=1 // loop_footer
      %s36 = sadd.s32 1, %s32
    $region7: #{tpu_custom_call.1} parent=1 // loop_footer_branch
      %31 = sbr.rel target = $region3
    $region8: #{tpu_custom_call.1} parent=1 // loop_exit
      _
    %1779 = vsyncpa [#allocation3], 1
    %s1780 = scalar_lea.sflag [#allocation3], 1
    %1781 = vsyncpa %s1780, 1
    %1782 = vsyncpa [#allocation6], 1
    %1783 = vsyncpa [#allocation9], 1
    %1784 = vsyncpa [#allocation4], 1
    %s1785 = scalar_lea.sflag [#allocation4], 1
    %1786 = vsyncpa %s1785, 1

</llo_original>
